<compile_context>
chip_gen: v7x
topology: tpu7x:2x2x1
jax: 0.10.0
libtpu: 0.0.40
codegen_flags: <defaults>
</compile_context>

<pallas_src>
import math
import functools

import jax
import jax.numpy as jnp
from jax import lax
from jax.experimental import pallas as pl
from jax.experimental.pallas import tpu as pltpu


def transformer_block_kernel(xq_ref,                          # (1, TQ, D) bf16 activations
                             wq_ref, wk_ref, wv_ref,          # fused (D, D) bf16
                             w1_ref, b1_ref, w2_ref, b2_ref, w3_ref, b3_ref,
                             o_ref,                           # (1, TQ, D) output tile
                             q_scr, k_scr, v_scr,             # bf16 VMEM scratch
                             attn_scr, hn_scr,                # f32 / bf16 scratch
                             m_scr, l_scr, acc_scr,           # flash softmax state
                             *, heads_num, eps, ffn_chunk):
    TQ, D = xq_ref.shape[1], xq_ref.shape[2]
    Hd = D // heads_num
    qt = pl.program_id(1)

    def rms(v):  # RMSNorm without weight (weight never applied in the module)
        return v * lax.rsqrt(jnp.mean(v * v, axis=-1, keepdims=True) + eps)

    # ---- Normalize this tile; project Q and this tile's K/V rows (full-width
    # ---- bf16 MXU matmuls with f32 accumulation). K/V rows are appended into
    # ---- scratch that persists across the sequential q-tile axis: causality
    # ---- guarantees tile qt only reads rows written at steps <= qt of the
    # ---- same batch element (batch is the outer grid axis).
    x_q = xq_ref[0].astype(jnp.float32)                       # (TQ, D) f32
    xn_q = rms(x_q).astype(jnp.bfloat16)
    q_scr[...] = jnp.dot(xn_q, wq_ref[...],
                         preferred_element_type=jnp.float32).astype(jnp.bfloat16)
    row0 = pl.multiple_of(qt * TQ, TQ)
    k_scr[pl.ds(row0, TQ), :] = jnp.dot(
        xn_q, wk_ref[...], preferred_element_type=jnp.float32).astype(jnp.bfloat16)
    v_scr[pl.ds(row0, TQ), :] = jnp.dot(
        xn_q, wv_ref[...], preferred_element_type=jnp.float32).astype(jnp.bfloat16)

    # ---- Within-tile causal mask (finite additive, strictly f32); only the
    # ---- diagonal KV tile needs it.
    ri = lax.broadcasted_iota(jnp.int32, (TQ, TQ), 0)
    ci = lax.broadcasted_iota(jnp.int32, (TQ, TQ), 1)
    neg_diag = jnp.where(ci <= ri, 0.0, -1e30).astype(jnp.float32)

    # ---- Flash-style causal attention over the qt+1 resident KV tiles.
    scale = 1.0 / math.sqrt(Hd)
    n_kv = qt + 1
    # TODO(synk): pair heads (2*Hd-wide PV outputs) for better 256-wide MXU fill
    # on v6e/v7x when Hd < 256 (no-op on v5e's 128x128 MXU).
    for h in range(heads_num):                                # static, small
        lo = h * Hd
        q_h = q_scr[:, lo:lo + Hd]                            # (TQ, Hd) bf16
        m_scr[...] = jnp.full((TQ, 1), -1e30, jnp.float32)
        l_scr[...] = jnp.zeros((TQ, 1), jnp.float32)
        acc_scr[...] = jnp.zeros((TQ, Hd), jnp.float32)

        @pl.loop(0, n_kv)                                     # dynamic trip count
        def _(j):
            r0 = pl.multiple_of(j * TQ, TQ)
            k_t = k_scr[pl.ds(r0, TQ), lo:lo + Hd]            # ref slices, no full
            v_t = v_scr[pl.ds(r0, TQ), lo:lo + Hd]            # (T, D) value loads
            # contract the Hd axes directly -> no explicit K transpose
            s = lax.dot_general(q_h, k_t, (((1,), (1,)), ((), ())),
                                preferred_element_type=jnp.float32) * scale
            s = s + neg_diag * (j == qt).astype(jnp.float32)  # mask diag tile only
            m_prev = m_scr[...]
            m_new = jnp.maximum(m_prev, jnp.max(s, axis=-1, keepdims=True))
            a = jnp.exp(m_prev - m_new)
            p = jnp.exp(s - m_new)
            l_scr[...] = a * l_scr[...] + jnp.sum(p, axis=-1, keepdims=True)
            acc_scr[...] = a * acc_scr[...] + jnp.dot(
                p.astype(jnp.bfloat16), v_t, preferred_element_type=jnp.float32)
            m_scr[...] = m_new

        inv_l = pl.reciprocal(l_scr[...], approx=True)        # EUP
        attn_scr[:, lo:lo + Hd] = acc_scr[...] * inv_l        # static lane offsets

    # ---- Residual 1 (f32). h1 stays resident in attn_scr so the FFN can
    # ---- accumulate straight into it (no large loop carries).
    attn_scr[...] = attn_scr[...] + x_q                       # h1
    hn_scr[...] = rms(attn_scr[...]).astype(jnp.bfloat16)

    # ---- FFN: chunk the intermediate dimension; silu(l1)*l3 per chunk, then
    # ---- accumulate the w2 contribution directly onto h1 in attn_scr.
    inter = w1_ref.shape[1]
    num_chunks = inter // ffn_chunk

    @pl.loop(0, num_chunks, unroll=num_chunks <= 8)
    def _(c):
        c0 = pl.multiple_of(c * ffn_chunk, ffn_chunk)
        hn = hn_scr[...]
        a1 = jnp.dot(hn, w1_ref[:, pl.ds(c0, ffn_chunk)],
                     preferred_element_type=jnp.float32) + b1_ref[:, pl.ds(c0, ffn_chunk)]
        g = jnp.dot(hn, w3_ref[:, pl.ds(c0, ffn_chunk)],
                    preferred_element_type=jnp.float32) + b3_ref[:, pl.ds(c0, ffn_chunk)]
        sg = (a1 * jax.nn.sigmoid(a1)) * g                    # silu(a1) * g
        attn_scr[...] += jnp.dot(sg.astype(jnp.bfloat16), w2_ref[pl.ds(c0, ffn_chunk), :],
                                 preferred_element_type=jnp.float32)

    o_ref[0] = (attn_scr[...] + b2_ref[...]).astype(o_ref.dtype)


def transformer_block_ds(x, params, *, heads_num, eps=1e-6,
                         q_tile=256, ffn_chunk=512):
    B, T, D = x.shape
    head_size = D // heads_num
    inter = params["w1"].shape[1]

    TQ = min(q_tile, T)
    assert T % TQ == 0, "context_length must be divisible by the query tile"
    FC = min(ffn_chunk, inter)
    assert inter % FC == 0, "inter_features must be divisible by the ffn chunk"

    # Fuse per-head projection weights (H, D, Hd) -> (D, H*Hd): Q/K/V become
    # single full-width MXU matmuls. Weights bf16 (f32 accumulation in-kernel),
    # biases stay f32.
    def fuse(w):
        return jnp.transpose(w, (1, 0, 2)).reshape(D, heads_num * head_size)

    wq = fuse(params["wq"]).astype(jnp.bfloat16)
    wk = fuse(params["wk"]).astype(jnp.bfloat16)
    wv = fuse(params["wv"]).astype(jnp.bfloat16)
    w1 = params["w1"].astype(jnp.bfloat16)
    w2 = params["w2"].astype(jnp.bfloat16)
    w3 = params["w3"].astype(jnp.bfloat16)
    b1 = params["b1"].astype(jnp.float32)
    b2 = params["b2"].astype(jnp.float32)
    b3 = params["b3"].astype(jnp.float32)

    # Activations DMA'd as bf16 (halves HBM traffic, biggest win on v5e).
    # Residual / norm math is upcast to f32 inside the kernel; output keeps
    # x.dtype. In production the previous layer would already emit bf16.
    x_in = x.astype(jnp.bfloat16)

    kernel = functools.partial(transformer_block_kernel,
                               heads_num=heads_num, eps=eps, ffn_chunk=FC)

    # Constant weights: single-buffered -- their index_map is constant so a
    # second pipeline buffer would only waste VMEM (halves resident weight VMEM).
    def const_spec(shape):
        nd = len(shape)
        return pl.BlockSpec(shape, lambda b, q, _nd=nd: (0,) * _nd,
                            pipeline_mode=pl.Buffered(1))

    # ~80% of the chip's physical VMEM: ~51 MiB on v7x (64 MiB/TC), ~102 MiB on
    # v5e/v6e (128 MiB) -- leaves headroom for Mosaic internal scratch.
    try:
        vmem_cap = pltpu.get_tpu_info().vmem_capacity_bytes
    except Exception:
        vmem_cap = 64 * 1024 * 1024            # conservative fallback (v7x per-core)
    vmem_limit = min(int(vmem_cap * 0.8), 112 * 1024 * 1024)

    # TODO(synk): stream w1/w2/w3 chunks from HBM (memory_space=pl.ANY +
    # emit_pipeline) and/or fp8 weights on v7x when 3*D*inter bf16 + 2*T*D bf16
    # no longer fits the VMEM budget at large D.
    # TODO(synk): when B==1 on dual-TC chips (v7x), split heads or q-tiles
    # across cores (core_map / VMEM_SHARED K/V); batch-only sharding idles a core.

    grid = (B, T // TQ)

    return pl.pallas_call(
        kernel,
        out_shape=jax.ShapeDtypeStruct((B, T, D), x.dtype),
        grid=grid,
        in_specs=[
            pl.BlockSpec((1, TQ, D), lambda b, q: (b, q, 0)),   # x tile (Q + this tile's K/V)
            const_spec((D, D)),                                 # wq fused (bf16)
            const_spec((D, D)),                                 # wk fused (bf16)
            const_spec((D, D)),                                 # wv fused (bf16)
            const_spec((D, inter)),                             # w1 (bf16)
            const_spec((1, inter)),                             # b1 (f32)
            const_spec((inter, D)),                             # w2 (bf16)
            const_spec((1, D)),                                 # b2 (f32)
            const_spec((D, inter)),                             # w3 (bf16)
            const_spec((1, inter)),                             # b3 (f32)
        ],
        out_specs=pl.BlockSpec((1, TQ, D), lambda b, q: (b, q, 0)),
        scratch_shapes=[
            pltpu.VMEM((TQ, D), jnp.bfloat16),         # Q projection (ref-sliced per head)
            pltpu.VMEM((T, D), jnp.bfloat16),          # K prefix, built incrementally
            pltpu.VMEM((T, D), jnp.bfloat16),          # V prefix, built incrementally
            pltpu.VMEM((TQ, D), jnp.float32),          # attn out -> h1 -> h1 + ffn
            pltpu.VMEM((TQ, D), jnp.bfloat16),         # rms(h1) for the FFN matmuls
            pltpu.VMEM((TQ, 1), jnp.float32),          # flash m
            pltpu.VMEM((TQ, 1), jnp.float32),          # flash l
            pltpu.VMEM((TQ, head_size), jnp.float32),  # flash acc (per head, reused)
        ],
        compiler_params=pltpu.CompilerParams(
            # Batch axis megacore-parallel. The q-tile axis MUST stay innermost
            # and sequential ("arbitrary"): K/V scratch read by tile qt is
            # produced by steps 0..qt of the same batch element.
            dimension_semantics=("parallel", "arbitrary"),
            vmem_limit_bytes=vmem_limit,
        ),
    )(x_in, wq, wk, wv, w1, b1, w2, b2, w3, b3)


def ref_forward(x, mask, params, *, heads_num, eps=1e-6):
    """Pure-JAX f32 reference matching the PyTorch forward."""
    def rms(v):
        return v * lax.rsqrt(jnp.mean(v * v, axis=-1, keepdims=True) + eps)

    hd = x.shape[-1] // heads_num
    xn = rms(x)
    outs = []
    for h in range(heads_num):
        q = xn @ params["wq"][h]
        k = xn @ params["wk"][h]
        v = xn @ params["wv"][h]
        s = (q @ jnp.swapaxes(k, -1, -2)) * (1.0 / math.sqrt(hd))
        s = jnp.where(mask == 0, -jnp.inf, s)
        p = jax.nn.softmax(s, axis=-1)
        outs.append(p @ v)
    h1 = x + jnp.concatenate(outs, axis=-1)
    hn = rms(h1)
    a = hn @ params["w1"] + params["b1"]
    g = hn @ params["w3"] + params["b3"]
    ff = (jax.nn.silu(a) * g) @ params["w2"] + params["b2"]
    return h1 + ff


if __name__ == "__main__":
    # Small shapes consistent with the module.
    B, T, D, H = 2, 8, 32, 4          # batch, context_length, d_model, heads
    Hd, INTER = D // H, 4 * D

    key = jax.random.PRNGKey(0)
    keys = jax.random.split(key, 12)
    sc = 0.05
    params = {
        "wq": jax.random.normal(keys[0], (H, D, Hd), jnp.float32) * sc,
        "wk": jax.random.normal(keys[1], (H, D, Hd), jnp.float32) * sc,
        "wv": jax.random.normal(keys[2], (H, D, Hd), jnp.float32) * sc,
        "w1": jax.random.normal(keys[3], (D, INTER), jnp.float32) * sc,
        "b1": jax.random.normal(keys[4], (1, INTER), jnp.float32) * sc,
        "w2": jax.random.normal(keys[5], (INTER, D), jnp.float32) * sc,
        "b2": jax.random.normal(keys[6], (1, D), jnp.float32) * sc,
        "w3": jax.random.normal(keys[7], (D, INTER), jnp.float32) * sc,
        "b3": jax.random.normal(keys[8], (1, INTER), jnp.float32) * sc,
    }
    x = jax.random.normal(keys[9], (B, T, D), jnp.float32)

    out = transformer_block_ds(x, params, heads_num=H)
    out = jax.block_until_ready(out)

    # f32 reference with the explicit causal mask ('None' path of the module).
    mask = jnp.tril(jnp.ones((T, T), jnp.int32))
    ref = ref_forward(x, mask, params, heads_num=H)

    assert out.shape == (B, T, D)
    max_err = float(jnp.max(jnp.abs(out - ref)))
    # bf16 activations/MXU inputs + approx reciprocal -> relaxed tolerance vs f32.
    assert jnp.allclose(out, ref, atol=2e-2, rtol=2e-2), \
        f"mismatch vs reference (max abs err {max_err})"

    print("KERNEL_OK")
</pallas_src>

<mosaic_0001>
module attributes {stable_mosaic.version = 11 : i64} {
  func.func @transformer_block_kernel(%arg0: i32, %arg1: i32, %arg2: memref<1x8x32xbf16, #tpu.memory_space<vmem>>, %arg3: memref<32x32xbf16, #tpu.memory_space<vmem>>, %arg4: memref<32x32xbf16, #tpu.memory_space<vmem>>, %arg5: memref<32x32xbf16, #tpu.memory_space<vmem>>, %arg6: memref<32x128xbf16, #tpu.memory_space<vmem>>, %arg7: memref<1x128xf32, #tpu.memory_space<vmem>>, %arg8: memref<128x32xbf16, #tpu.memory_space<vmem>>, %arg9: memref<1x32xf32, #tpu.memory_space<vmem>>, %arg10: memref<32x128xbf16, #tpu.memory_space<vmem>>, %arg11: memref<1x128xf32, #tpu.memory_space<vmem>>, %arg12: memref<1x8x32xf32, #tpu.memory_space<vmem>>, %arg13: memref<8x32xbf16, #tpu.memory_space<vmem>>, %arg14: memref<8x32xbf16, #tpu.memory_space<vmem>>, %arg15: memref<8x32xbf16, #tpu.memory_space<vmem>>, %arg16: memref<8x32xf32, #tpu.memory_space<vmem>>, %arg17: memref<8x32xbf16, #tpu.memory_space<vmem>>, %arg18: memref<8x1xf32, #tpu.memory_space<vmem>>, %arg19: memref<8x1xf32, #tpu.memory_space<vmem>>, %arg20: memref<8x8xf32, #tpu.memory_space<vmem>>) attributes {dimension_semantics = [#tpu.dimension_semantics<parallel>, #tpu.dimension_semantics<arbitrary>], iteration_bounds = array<i64: 2, 1>, scalar_prefetch = 0 : i64, scratch_operands = 8 : i64, tpu.core_type = #tpu.core_type<tc>, window_params = [{transform_indices = @transform_0, window_bounds = array<i64: 1, 8, 32>}, {pipeline_mode = #tpu.pipeline_mode<synchronous>, transform_indices = @transform_1, window_bounds = array<i64: 32, 32>}, {pipeline_mode = #tpu.pipeline_mode<synchronous>, transform_indices = @transform_2, window_bounds = array<i64: 32, 32>}, {pipeline_mode = #tpu.pipeline_mode<synchronous>, transform_indices = @transform_3, window_bounds = array<i64: 32, 32>}, {pipeline_mode = #tpu.pipeline_mode<synchronous>, transform_indices = @transform_4, window_bounds = array<i64: 32, 128>}, {pipeline_mode = #tpu.pipeline_mode<synchronous>, transform_indices = @transform_5, window_bounds = array<i64: 1, 128>}, {pipeline_mode = #tpu.pipeline_mode<synchronous>, transform_indices = @transform_6, window_bounds = array<i64: 128, 32>}, {pipeline_mode = #tpu.pipeline_mode<synchronous>, transform_indices = @transform_7, window_bounds = array<i64: 1, 32>}, {pipeline_mode = #tpu.pipeline_mode<synchronous>, transform_indices = @transform_8, window_bounds = array<i64: 32, 128>}, {pipeline_mode = #tpu.pipeline_mode<synchronous>, transform_indices = @transform_9, window_bounds = array<i64: 1, 128>}, {transform_indices = @transform_10, window_bounds = array<i64: 1, 8, 32>}]} {
    %c0 = arith.constant 0 : index
    %c0_0 = arith.constant 0 : index
    %c0_1 = arith.constant 0 : index
    %0 = vector.load %arg2[%c0, %c0_0, %c0_1] : memref<1x8x32xbf16, #tpu.memory_space<vmem>>, vector<1x8x32xbf16>
    %1 = vector.shape_cast %0 : vector<1x8x32xbf16> to vector<8x32xbf16>
    %2 = arith.extf %1 : vector<8x32xbf16> to vector<8x32xf32>
    %3 = arith.mulf %2, %2 : vector<8x32xf32>
    %cst = arith.constant dense<0.000000e+00> : vector<8xf32>
    %4 = vector.multi_reduction <add>, %3, %cst [1] : vector<8x32xf32> to vector<8xf32>
    %5 = vector.shape_cast %4 : vector<8xf32> to vector<8x1xf32>
    %cst_2 = arith.constant 3.200000e+01 : f32
    %6 = vector.broadcast %cst_2 : f32 to vector<8x1xf32>
    %7 = arith.divf %5, %6 : vector<8x1xf32>
    %cst_3 = arith.constant 9.99999997E-7 : f32
    %8 = vector.broadcast %cst_3 : f32 to vector<8x1xf32>
    %9 = arith.addf %7, %8 : vector<8x1xf32>
    %10 = math.rsqrt %9 : vector<8x1xf32>
    %11 = vector.broadcast %10 : vector<8x1xf32> to vector<8x32xf32>
    %12 = arith.mulf %2, %11 : vector<8x32xf32>
    %13 = arith.truncf %12 : vector<8x32xf32> to vector<8x32xbf16>
    %c0_4 = arith.constant 0 : index
    %c0_5 = arith.constant 0 : index
    %14 = vector.load %arg3[%c0_4, %c0_5] : memref<32x32xbf16, #tpu.memory_space<vmem>>, vector<32x32xbf16>
    %cst_6 = arith.constant dense<0.000000e+00> : vector<8x32xf32>
    %15 = tpu.matmul %13, %14, %cst_6 {dimension_numbers = #tpu.dot_dimension_numbers<[1], [0], [0], [1], [0, 0, 1, 1], [], []>} : vector<8x32xbf16>, vector<32x32xbf16>, vector<8x32xf32> -> vector<8x32xf32>
    %16 = arith.truncf %15 : vector<8x32xf32> to vector<8x32xbf16>
    %c0_7 = arith.constant 0 : index
    %c0_8 = arith.constant 0 : index
    %17 = vector.load %arg13[%c0_7, %c0_8] : memref<8x32xbf16, #tpu.memory_space<vmem>>, vector<8x32xbf16>
    tpu.vector_store %arg13[%c0_7, %c0_8], %16 {strides = array<i32>} : memref<8x32xbf16, #tpu.memory_space<vmem>>, vector<8x32xbf16>,
    %c8_i32 = arith.constant 8 : i32
    %18 = arith.muli %arg1, %c8_i32 : i32
    %19 = tpu.assume_multiple %18, 8 : i32
    %c0_9 = arith.constant 0 : index
    %c0_10 = arith.constant 0 : index
    %20 = vector.load %arg4[%c0_9, %c0_10] : memref<32x32xbf16, #tpu.memory_space<vmem>>, vector<32x32xbf16>
    %cst_11 = arith.constant dense<0.000000e+00> : vector<8x32xf32>
    %21 = tpu.matmul %13, %20, %cst_11 {dimension_numbers = #tpu.dot_dimension_numbers<[1], [0], [0], [1], [0, 0, 1, 1], [], []>} : vector<8x32xbf16>, vector<32x32xbf16>, vector<8x32xf32> -> vector<8x32xf32>
    %22 = arith.truncf %21 : vector<8x32xf32> to vector<8x32xbf16>
    %23 = arith.index_cast %19 : i32 to index
    %c0_12 = arith.constant 0 : index
    %24 = vector.load %arg14[%23, %c0_12] : memref<8x32xbf16, #tpu.memory_space<vmem>>, vector<8x32xbf16>
    tpu.vector_store %arg14[%23, %c0_12], %22 {strides = array<i32>} : memref<8x32xbf16, #tpu.memory_space<vmem>>, vector<8x32xbf16>,
    %c0_13 = arith.constant 0 : index
    %c0_14 = arith.constant 0 : index
    %25 = vector.load %arg5[%c0_13, %c0_14] : memref<32x32xbf16, #tpu.memory_space<vmem>>, vector<32x32xbf16>
    %cst_15 = arith.constant dense<0.000000e+00> : vector<8x32xf32>
    %26 = tpu.matmul %13, %25, %cst_15 {dimension_numbers = #tpu.dot_dimension_numbers<[1], [0], [0], [1], [0, 0, 1, 1], [], []>} : vector<8x32xbf16>, vector<32x32xbf16>, vector<8x32xf32> -> vector<8x32xf32>
    %27 = arith.truncf %26 : vector<8x32xf32> to vector<8x32xbf16>
    %28 = arith.index_cast %19 : i32 to index
    %c0_16 = arith.constant 0 : index
    %29 = vector.load %arg15[%28, %c0_16] : memref<8x32xbf16, #tpu.memory_space<vmem>>, vector<8x32xbf16>
    tpu.vector_store %arg15[%28, %c0_16], %27 {strides = array<i32>} : memref<8x32xbf16, #tpu.memory_space<vmem>>, vector<8x32xbf16>,
    %30 = tpu.iota {dimensions = array<i32: 0>} : vector<8x8xi32>
    %31 = tpu.iota {dimensions = array<i32: 1>} : vector<8x8xi32>
    %32 = arith.cmpi sle, %31, %30 : vector<8x8xi32>
    %cst_17 = arith.constant 0.000000e+00 : f32
    %cst_18 = arith.constant -1.000000e+30 : f32
    %33 = vector.broadcast %cst_17 : f32 to vector<8x8xf32>
    %34 = vector.broadcast %cst_18 : f32 to vector<8x8xf32>
    %35 = arith.select %32, %33, %34 : vector<8x8xi1>, vector<8x8xf32>
    %c1_i32 = arith.constant 1 : i32
    %36 = arith.addi %arg1, %c1_i32 : i32
    %c0_19 = arith.constant 0 : index
    %c0_20 = arith.constant 0 : index
    %37 = vector.load %arg13[%c0_19, %c0_20] : memref<8x32xbf16, #tpu.memory_space<vmem>>, vector<8x8xbf16>
    %cst_21 = arith.constant -1.000000e+30 : f32
    %38 = vector.broadcast %cst_21 : f32 to vector<8x1xf32>
    %c0_22 = arith.constant 0 : index
    %c0_23 = arith.constant 0 : index
    %39 = vector.load %arg18[%c0_22, %c0_23] : memref<8x1xf32, #tpu.memory_space<vmem>>, vector<8x1xf32>
    tpu.vector_store %arg18[%c0_22, %c0_23], %38 {strides = array<i32>} : memref<8x1xf32, #tpu.memory_space<vmem>>, vector<8x1xf32>,
    %cst_24 = arith.constant 0.000000e+00 : f32
    %40 = vector.broadcast %cst_24 : f32 to vector<8x1xf32>
    %c0_25 = arith.constant 0 : index
    %c0_26 = arith.constant 0 : index
    %41 = vector.load %arg19[%c0_25, %c0_26] : memref<8x1xf32, #tpu.memory_space<vmem>>, vector<8x1xf32>
    tpu.vector_store %arg19[%c0_25, %c0_26], %40 {strides = array<i32>} : memref<8x1xf32, #tpu.memory_space<vmem>>, vector<8x1xf32>,
    %cst_27 = arith.constant 0.000000e+00 : f32
    %42 = vector.broadcast %cst_27 : f32 to vector<8x8xf32>
    %c0_28 = arith.constant 0 : index
    %c0_29 = arith.constant 0 : index
    %43 = vector.load %arg20[%c0_28, %c0_29] : memref<8x8xf32, #tpu.memory_space<vmem>>, vector<8x8xf32>
    tpu.vector_store %arg20[%c0_28, %c0_29], %42 {strides = array<i32>} : memref<8x8xf32, #tpu.memory_space<vmem>>, vector<8x8xf32>,
    %c0_i32 = arith.constant 0 : i32
    %44 = arith.subi %36, %c0_i32 : i32
    %c1_i32_30 = arith.constant 1 : i32
    %c1_i32_31 = arith.constant 1 : i32
    %45 = arith.subi %c1_i32_30, %c1_i32_31 : i32
    %46 = arith.addi %44, %45 : i32
    %c1_i32_32 = arith.constant 1 : i32
    %47 = arith.divsi %46, %c1_i32_32 : i32
    %c1_i32_33 = arith.constant 1 : i32
    %c0_i32_34 = arith.constant 0 : i32
    %c0_i32_35 = arith.constant 0 : i32
    %48 = arith.subi %47, %c0_i32_35 : i32
    %49 = arith.addi %c0_i32_35, %48 : i32
    %c1_i32_36 = arith.constant 1 : i32
    scf.for %arg21 = %c0_i32_35 to %49 step %c1_i32_36  : i32 {
      %169 = arith.muli %arg21, %c1_i32_33 : i32
      %170 = arith.addi %c0_i32_34, %169 : i32
      %c8_i32_152 = arith.constant 8 : i32
      %171 = arith.muli %170, %c8_i32_152 : i32
      %172 = tpu.assume_multiple %171, 8 : i32
      %173 = arith.index_cast %172 : i32 to index
      %c0_153 = arith.constant 0 : index
      %174 = vector.load %arg14[%173, %c0_153] : memref<8x32xbf16, #tpu.memory_space<vmem>>, vector<8x8xbf16>
      %175 = arith.index_cast %172 : i32 to index
      %c0_154 = arith.constant 0 : index
      %176 = vector.load %arg15[%175, %c0_154] : memref<8x32xbf16, #tpu.memory_space<vmem>>, vector<8x8xbf16>
      %cst_155 = arith.constant dense<0.000000e+00> : vector<8x8xf32>
      %177 = tpu.matmul %37, %174, %cst_155 {dimension_numbers = #tpu.dot_dimension_numbers<[1], [1], [0], [0], [0, 0, 1, 0], [], []>} : vector<8x8xbf16>, vector<8x8xbf16>, vector<8x8xf32> -> vector<8x8xf32>
      %cst_156 = arith.constant 0.353553385 : f32
      %178 = vector.broadcast %cst_156 : f32 to vector<8x8xf32>
      %179 = arith.mulf %177, %178 : vector<8x8xf32>
      %180 = arith.cmpi eq, %170, %arg1 : i32
      %181 = arith.extui %180 : i1 to i32
      %182 = arith.sitofp %181 : i32 to f32
      %183 = vector.broadcast %182 : f32 to vector<8x8xf32>
      %184 = arith.mulf %35, %183 : vector<8x8xf32>
      %185 = arith.addf %179, %184 : vector<8x8xf32>
      %c0_157 = arith.constant 0 : index
      %c0_158 = arith.constant 0 : index
      %186 = vector.load %arg18[%c0_157, %c0_158] : memref<8x1xf32, #tpu.memory_space<vmem>>, vector<8x1xf32>
      %cst_159 = arith.constant dense<0xFF800000> : vector<8xf32>
      %187 = vector.multi_reduction <maximumf>, %185, %cst_159 [1] : vector<8x8xf32> to vector<8xf32>
      %188 = vector.shape_cast %187 : vector<8xf32> to vector<8x1xf32>
      %189 = arith.maximumf %186, %188 : vector<8x1xf32>
      %190 = arith.subf %186, %189 : vector<8x1xf32>
      %191 = math.exp %190 : vector<8x1xf32>
      %192 = vector.broadcast %189 : vector<8x1xf32> to vector<8x8xf32>
      %193 = arith.subf %185, %192 : vector<8x8xf32>
      %194 = math.exp %193 : vector<8x8xf32>
      %c0_160 = arith.constant 0 : index
      %c0_161 = arith.constant 0 : index
      %195 = vector.load %arg19[%c0_160, %c0_161] : memref<8x1xf32, #tpu.memory_space<vmem>>, vector<8x1xf32>
      %196 = arith.mulf %191, %195 : vector<8x1xf32>
      %cst_162 = arith.constant dense<0.000000e+00> : vector<8xf32>
      %197 = vector.multi_reduction <add>, %194, %cst_162 [1] : vector<8x8xf32> to vector<8xf32>
      %198 = vector.shape_cast %197 : vector<8xf32> to vector<8x1xf32>
      %199 = arith.addf %196, %198 : vector<8x1xf32>
      %c0_163 = arith.constant 0 : index
      %c0_164 = arith.constant 0 : index
      %200 = vector.load %arg19[%c0_163, %c0_164] : memref<8x1xf32, #tpu.memory_space<vmem>>, vector<8x1xf32>
      tpu.vector_store %arg19[%c0_163, %c0_164], %199 {strides = array<i32>} : memref<8x1xf32, #tpu.memory_space<vmem>>, vector<8x1xf32>,
      %c0_165 = arith.constant 0 : index
      %c0_166 = arith.constant 0 : index
      %201 = vector.load %arg20[%c0_165, %c0_166] : memref<8x8xf32, #tpu.memory_space<vmem>>, vector<8x8xf32>
      %202 = vector.broadcast %191 : vector<8x1xf32> to vector<8x8xf32>
      %203 = arith.mulf %202, %201 : vector<8x8xf32>
      %204 = arith.truncf %194 : vector<8x8xf32> to vector<8x8xbf16>
      %cst_167 = arith.constant dense<0.000000e+00> : vector<8x8xf32>
      %205 = tpu.matmul %204, %176, %cst_167 {dimension_numbers = #tpu.dot_dimension_numbers<[1], [0], [0], [1], [0, 0, 1, 1], [], []>} : vector<8x8xbf16>, vector<8x8xbf16>, vector<8x8xf32> -> vector<8x8xf32>
      %206 = arith.addf %203, %205 : vector<8x8xf32>
      %c0_168 = arith.constant 0 : index
      %c0_169 = arith.constant 0 : index
      %207 = vector.load %arg20[%c0_168, %c0_169] : memref<8x8xf32, #tpu.memory_space<vmem>>, vector<8x8xf32>
      tpu.vector_store %arg20[%c0_168, %c0_169], %206 {strides = array<i32>} : memref<8x8xf32, #tpu.memory_space<vmem>>, vector<8x8xf32>,
      %c0_170 = arith.constant 0 : index
      %c0_171 = arith.constant 0 : index
      %208 = vector.load %arg18[%c0_170, %c0_171] : memref<8x1xf32, #tpu.memory_space<vmem>>, vector<8x1xf32>
      tpu.vector_store %arg18[%c0_170, %c0_171], %189 {strides = array<i32>} : memref<8x1xf32, #tpu.memory_space<vmem>>, vector<8x1xf32>,
    }
    %c0_37 = arith.constant 0 : index
    %c0_38 = arith.constant 0 : index
    %50 = vector.load %arg19[%c0_37, %c0_38] : memref<8x1xf32, #tpu.memory_space<vmem>>, vector<8x1xf32>
    %51 = tpu.reciprocal %50 {approx = true} : vector<8x1xf32> -> vector<8x1xf32>
    %c0_39 = arith.constant 0 : index
    %c0_40 = arith.constant 0 : index
    %52 = vector.load %arg20[%c0_39, %c0_40] : memref<8x8xf32, #tpu.memory_space<vmem>>, vector<8x8xf32>
    %53 = vector.broadcast %51 : vector<8x1xf32> to vector<8x8xf32>
    %54 = arith.mulf %52, %53 : vector<8x8xf32>
    %c0_41 = arith.constant 0 : index
    %c0_42 = arith.constant 0 : index
    %55 = vector.load %arg16[%c0_41, %c0_42] : memref<8x32xf32, #tpu.memory_space<vmem>>, vector<8x8xf32>
    tpu.vector_store %arg16[%c0_41, %c0_42], %54 {strides = array<i32>} : memref<8x32xf32, #tpu.memory_space<vmem>>, vector<8x8xf32>,
    %c0_43 = arith.constant 0 : index
    %c8 = arith.constant 8 : index
    %56 = vector.load %arg13[%c0_43, %c8] : memref<8x32xbf16, #tpu.memory_space<vmem>>, vector<8x8xbf16>
    %cst_44 = arith.constant -1.000000e+30 : f32
    %57 = vector.broadcast %cst_44 : f32 to vector<8x1xf32>
    %c0_45 = arith.constant 0 : index
    %c0_46 = arith.constant 0 : index
    %58 = vector.load %arg18[%c0_45, %c0_46] : memref<8x1xf32, #tpu.memory_space<vmem>>, vector<8x1xf32>
    tpu.vector_store %arg18[%c0_45, %c0_46], %57 {strides = array<i32>} : memref<8x1xf32, #tpu.memory_space<vmem>>, vector<8x1xf32>,
    %cst_47 = arith.constant 0.000000e+00 : f32
    %59 = vector.broadcast %cst_47 : f32 to vector<8x1xf32>
    %c0_48 = arith.constant 0 : index
    %c0_49 = arith.constant 0 : index
    %60 = vector.load %arg19[%c0_48, %c0_49] : memref<8x1xf32, #tpu.memory_space<vmem>>, vector<8x1xf32>
    tpu.vector_store %arg19[%c0_48, %c0_49], %59 {strides = array<i32>} : memref<8x1xf32, #tpu.memory_space<vmem>>, vector<8x1xf32>,
    %cst_50 = arith.constant 0.000000e+00 : f32
    %61 = vector.broadcast %cst_50 : f32 to vector<8x8xf32>
    %c0_51 = arith.constant 0 : index
    %c0_52 = arith.constant 0 : index
    %62 = vector.load %arg20[%c0_51, %c0_52] : memref<8x8xf32, #tpu.memory_space<vmem>>, vector<8x8xf32>
    tpu.vector_store %arg20[%c0_51, %c0_52], %61 {strides = array<i32>} : memref<8x8xf32, #tpu.memory_space<vmem>>, vector<8x8xf32>,
    %c0_i32_53 = arith.constant 0 : i32
    %63 = arith.subi %36, %c0_i32_53 : i32
    %c1_i32_54 = arith.constant 1 : i32
    %c1_i32_55 = arith.constant 1 : i32
    %64 = arith.subi %c1_i32_54, %c1_i32_55 : i32
    %65 = arith.addi %63, %64 : i32
    %c1_i32_56 = arith.constant 1 : i32
    %66 = arith.divsi %65, %c1_i32_56 : i32
    %c1_i32_57 = arith.constant 1 : i32
    %c0_i32_58 = arith.constant 0 : i32
    %c0_i32_59 = arith.constant 0 : i32
    %67 = arith.subi %66, %c0_i32_59 : i32
    %68 = arith.addi %c0_i32_59, %67 : i32
    %c1_i32_60 = arith.constant 1 : i32
    scf.for %arg21 = %c0_i32_59 to %68 step %c1_i32_60  : i32 {
      %169 = arith.muli %arg21, %c1_i32_57 : i32
      %170 = arith.addi %c0_i32_58, %169 : i32
      %c8_i32_152 = arith.constant 8 : i32
      %171 = arith.muli %170, %c8_i32_152 : i32
      %172 = tpu.assume_multiple %171, 8 : i32
      %173 = arith.index_cast %172 : i32 to index
      %c8_153 = arith.constant 8 : index
      %174 = vector.load %arg14[%173, %c8_153] : memref<8x32xbf16, #tpu.memory_space<vmem>>, vector<8x8xbf16>
      %175 = arith.index_cast %172 : i32 to index
      %c8_154 = arith.constant 8 : index
      %176 = vector.load %arg15[%175, %c8_154] : memref<8x32xbf16, #tpu.memory_space<vmem>>, vector<8x8xbf16>
      %cst_155 = arith.constant dense<0.000000e+00> : vector<8x8xf32>
      %177 = tpu.matmul %56, %174, %cst_155 {dimension_numbers = #tpu.dot_dimension_numbers<[1], [1], [0], [0], [0, 0, 1, 0], [], []>} : vector<8x8xbf16>, vector<8x8xbf16>, vector<8x8xf32> -> vector<8x8xf32>
      %cst_156 = arith.constant 0.353553385 : f32
      %178 = vector.broadcast %cst_156 : f32 to vector<8x8xf32>
      %179 = arith.mulf %177, %178 : vector<8x8xf32>
      %180 = arith.cmpi eq, %170, %arg1 : i32
      %181 = arith.extui %180 : i1 to i32
      %182 = arith.sitofp %181 : i32 to f32
      %183 = vector.broadcast %182 : f32 to vector<8x8xf32>
      %184 = arith.mulf %35, %183 : vector<8x8xf32>
      %185 = arith.addf %179, %184 : vector<8x8xf32>
      %c0_157 = arith.constant 0 : index
      %c0_158 = arith.constant 0 : index
      %186 = vector.load %arg18[%c0_157, %c0_158] : memref<8x1xf32, #tpu.memory_space<vmem>>, vector<8x1xf32>
      %cst_159 = arith.constant dense<0xFF800000> : vector<8xf32>
      %187 = vector.multi_reduction <maximumf>, %185, %cst_159 [1] : vector<8x8xf32> to vector<8xf32>
      %188 = vector.shape_cast %187 : vector<8xf32> to vector<8x1xf32>
      %189 = arith.maximumf %186, %188 : vector<8x1xf32>
      %190 = arith.subf %186, %189 : vector<8x1xf32>
      %191 = math.exp %190 : vector<8x1xf32>
      %192 = vector.broadcast %189 : vector<8x1xf32> to vector<8x8xf32>
      %193 = arith.subf %185, %192 : vector<8x8xf32>
      %194 = math.exp %193 : vector<8x8xf32>
      %c0_160 = arith.constant 0 : index
      %c0_161 = arith.constant 0 : index
      %195 = vector.load %arg19[%c0_160, %c0_161] : memref<8x1xf32, #tpu.memory_space<vmem>>, vector<8x1xf32>
      %196 = arith.mulf %191, %195 : vector<8x1xf32>
      %cst_162 = arith.constant dense<0.000000e+00> : vector<8xf32>
      %197 = vector.multi_reduction <add>, %194, %cst_162 [1] : vector<8x8xf32> to vector<8xf32>
      %198 = vector.shape_cast %197 : vector<8xf32> to vector<8x1xf32>
      %199 = arith.addf %196, %198 : vector<8x1xf32>
      %c0_163 = arith.constant 0 : index
      %c0_164 = arith.constant 0 : index
      %200 = vector.load %arg19[%c0_163, %c0_164] : memref<8x1xf32, #tpu.memory_space<vmem>>, vector<8x1xf32>
      tpu.vector_store %arg19[%c0_163, %c0_164], %199 {strides = array<i32>} : memref<8x1xf32, #tpu.memory_space<vmem>>, vector<8x1xf32>,
      %c0_165 = arith.constant 0 : index
      %c0_166 = arith.constant 0 : index
      %201 = vector.load %arg20[%c0_165, %c0_166] : memref<8x8xf32, #tpu.memory_space<vmem>>, vector<8x8xf32>
      %202 = vector.broadcast %191 : vector<8x1xf32> to vector<8x8xf32>
      %203 = arith.mulf %202, %201 : vector<8x8xf32>
      %204 = arith.truncf %194 : vector<8x8xf32> to vector<8x8xbf16>
      %cst_167 = arith.constant dense<0.000000e+00> : vector<8x8xf32>
      %205 = tpu.matmul %204, %176, %cst_167 {dimension_numbers = #tpu.dot_dimension_numbers<[1], [0], [0], [1], [0, 0, 1, 1], [], []>} : vector<8x8xbf16>, vector<8x8xbf16>, vector<8x8xf32> -> vector<8x8xf32>
      %206 = arith.addf %203, %205 : vector<8x8xf32>
      %c0_168 = arith.constant 0 : index
      %c0_169 = arith.constant 0 : index
      %207 = vector.load %arg20[%c0_168, %c0_169] : memref<8x8xf32, #tpu.memory_space<vmem>>, vector<8x8xf32>
      tpu.vector_store %arg20[%c0_168, %c0_169], %206 {strides = array<i32>} : memref<8x8xf32, #tpu.memory_space<vmem>>, vector<8x8xf32>,
      %c0_170 = arith.constant 0 : index
      %c0_171 = arith.constant 0 : index
      %208 = vector.load %arg18[%c0_170, %c0_171] : memref<8x1xf32, #tpu.memory_space<vmem>>, vector<8x1xf32>
      tpu.vector_store %arg18[%c0_170, %c0_171], %189 {strides = array<i32>} : memref<8x1xf32, #tpu.memory_space<vmem>>, vector<8x1xf32>,
    }
    %c0_61 = arith.constant 0 : index
    %c0_62 = arith.constant 0 : index
    %69 = vector.load %arg19[%c0_61, %c0_62] : memref<8x1xf32, #tpu.memory_space<vmem>>, vector<8x1xf32>
    %70 = tpu.reciprocal %69 {approx = true} : vector<8x1xf32> -> vector<8x1xf32>
    %c0_63 = arith.constant 0 : index
    %c0_64 = arith.constant 0 : index
    %71 = vector.load %arg20[%c0_63, %c0_64] : memref<8x8xf32, #tpu.memory_space<vmem>>, vector<8x8xf32>
    %72 = vector.broadcast %70 : vector<8x1xf32> to vector<8x8xf32>
    %73 = arith.mulf %71, %72 : vector<8x8xf32>
    %c0_65 = arith.constant 0 : index
    %c8_66 = arith.constant 8 : index
    %74 = vector.load %arg16[%c0_65, %c8_66] : memref<8x32xf32, #tpu.memory_space<vmem>>, vector<8x8xf32>
    tpu.vector_store %arg16[%c0_65, %c8_66], %73 {strides = array<i32>} : memref<8x32xf32, #tpu.memory_space<vmem>>, vector<8x8xf32>,
    %c0_67 = arith.constant 0 : index
    %c16 = arith.constant 16 : index
    %75 = vector.load %arg13[%c0_67, %c16] : memref<8x32xbf16, #tpu.memory_space<vmem>>, vector<8x8xbf16>
    %cst_68 = arith.constant -1.000000e+30 : f32
    %76 = vector.broadcast %cst_68 : f32 to vector<8x1xf32>
    %c0_69 = arith.constant 0 : index
    %c0_70 = arith.constant 0 : index
    %77 = vector.load %arg18[%c0_69, %c0_70] : memref<8x1xf32, #tpu.memory_space<vmem>>, vector<8x1xf32>
    tpu.vector_store %arg18[%c0_69, %c0_70], %76 {strides = array<i32>} : memref<8x1xf32, #tpu.memory_space<vmem>>, vector<8x1xf32>,
    %cst_71 = arith.constant 0.000000e+00 : f32
    %78 = vector.broadcast %cst_71 : f32 to vector<8x1xf32>
    %c0_72 = arith.constant 0 : index
    %c0_73 = arith.constant 0 : index
    %79 = vector.load %arg19[%c0_72, %c0_73] : memref<8x1xf32, #tpu.memory_space<vmem>>, vector<8x1xf32>
    tpu.vector_store %arg19[%c0_72, %c0_73], %78 {strides = array<i32>} : memref<8x1xf32, #tpu.memory_space<vmem>>, vector<8x1xf32>,
    %cst_74 = arith.constant 0.000000e+00 : f32
    %80 = vector.broadcast %cst_74 : f32 to vector<8x8xf32>
    %c0_75 = arith.constant 0 : index
    %c0_76 = arith.constant 0 : index
    %81 = vector.load %arg20[%c0_75, %c0_76] : memref<8x8xf32, #tpu.memory_space<vmem>>, vector<8x8xf32>
    tpu.vector_store %arg20[%c0_75, %c0_76], %80 {strides = array<i32>} : memref<8x8xf32, #tpu.memory_space<vmem>>, vector<8x8xf32>,
    %c0_i32_77 = arith.constant 0 : i32
    %82 = arith.subi %36, %c0_i32_77 : i32
    %c1_i32_78 = arith.constant 1 : i32
    %c1_i32_79 = arith.constant 1 : i32
    %83 = arith.subi %c1_i32_78, %c1_i32_79 : i32
    %84 = arith.addi %82, %83 : i32
    %c1_i32_80 = arith.constant 1 : i32
    %85 = arith.divsi %84, %c1_i32_80 : i32
    %c1_i32_81 = arith.constant 1 : i32
    %c0_i32_82 = arith.constant 0 : i32
    %c0_i32_83 = arith.constant 0 : i32
    %86 = arith.subi %85, %c0_i32_83 : i32
    %87 = arith.addi %c0_i32_83, %86 : i32
    %c1_i32_84 = arith.constant 1 : i32
    scf.for %arg21 = %c0_i32_83 to %87 step %c1_i32_84  : i32 {
      %169 = arith.muli %arg21, %c1_i32_81 : i32
      %170 = arith.addi %c0_i32_82, %169 : i32
      %c8_i32_152 = arith.constant 8 : i32
      %171 = arith.muli %170, %c8_i32_152 : i32
      %172 = tpu.assume_multiple %171, 8 : i32
      %173 = arith.index_cast %172 : i32 to index
      %c16_153 = arith.constant 16 : index
      %174 = vector.load %arg14[%173, %c16_153] : memref<8x32xbf16, #tpu.memory_space<vmem>>, vector<8x8xbf16>
      %175 = arith.index_cast %172 : i32 to index
      %c16_154 = arith.constant 16 : index
      %176 = vector.load %arg15[%175, %c16_154] : memref<8x32xbf16, #tpu.memory_space<vmem>>, vector<8x8xbf16>
      %cst_155 = arith.constant dense<0.000000e+00> : vector<8x8xf32>
      %177 = tpu.matmul %75, %174, %cst_155 {dimension_numbers = #tpu.dot_dimension_numbers<[1], [1], [0], [0], [0, 0, 1, 0], [], []>} : vector<8x8xbf16>, vector<8x8xbf16>, vector<8x8xf32> -> vector<8x8xf32>
      %cst_156 = arith.constant 0.353553385 : f32
      %178 = vector.broadcast %cst_156 : f32 to vector<8x8xf32>
      %179 = arith.mulf %177, %178 : vector<8x8xf32>
      %180 = arith.cmpi eq, %170, %arg1 : i32
      %181 = arith.extui %180 : i1 to i32
      %182 = arith.sitofp %181 : i32 to f32
      %183 = vector.broadcast %182 : f32 to vector<8x8xf32>
      %184 = arith.mulf %35, %183 : vector<8x8xf32>
      %185 = arith.addf %179, %184 : vector<8x8xf32>
      %c0_157 = arith.constant 0 : index
      %c0_158 = arith.constant 0 : index
      %186 = vector.load %arg18[%c0_157, %c0_158] : memref<8x1xf32, #tpu.memory_space<vmem>>, vector<8x1xf32>
      %cst_159 = arith.constant dense<0xFF800000> : vector<8xf32>
      %187 = vector.multi_reduction <maximumf>, %185, %cst_159 [1] : vector<8x8xf32> to vector<8xf32>
      %188 = vector.shape_cast %187 : vector<8xf32> to vector<8x1xf32>
      %189 = arith.maximumf %186, %188 : vector<8x1xf32>
      %190 = arith.subf %186, %189 : vector<8x1xf32>
      %191 = math.exp %190 : vector<8x1xf32>
      %192 = vector.broadcast %189 : vector<8x1xf32> to vector<8x8xf32>
      %193 = arith.subf %185, %192 : vector<8x8xf32>
      %194 = math.exp %193 : vector<8x8xf32>
      %c0_160 = arith.constant 0 : index
      %c0_161 = arith.constant 0 : index
      %195 = vector.load %arg19[%c0_160, %c0_161] : memref<8x1xf32, #tpu.memory_space<vmem>>, vector<8x1xf32>
      %196 = arith.mulf %191, %195 : vector<8x1xf32>
      %cst_162 = arith.constant dense<0.000000e+00> : vector<8xf32>
      %197 = vector.multi_reduction <add>, %194, %cst_162 [1] : vector<8x8xf32> to vector<8xf32>
      %198 = vector.shape_cast %197 : vector<8xf32> to vector<8x1xf32>
      %199 = arith.addf %196, %198 : vector<8x1xf32>
      %c0_163 = arith.constant 0 : index
      %c0_164 = arith.constant 0 : index
      %200 = vector.load %arg19[%c0_163, %c0_164] : memref<8x1xf32, #tpu.memory_space<vmem>>, vector<8x1xf32>
      tpu.vector_store %arg19[%c0_163, %c0_164], %199 {strides = array<i32>} : memref<8x1xf32, #tpu.memory_space<vmem>>, vector<8x1xf32>,
      %c0_165 = arith.constant 0 : index
      %c0_166 = arith.constant 0 : index
      %201 = vector.load %arg20[%c0_165, %c0_166] : memref<8x8xf32, #tpu.memory_space<vmem>>, vector<8x8xf32>
      %202 = vector.broadcast %191 : vector<8x1xf32> to vector<8x8xf32>
      %203 = arith.mulf %202, %201 : vector<8x8xf32>
      %204 = arith.truncf %194 : vector<8x8xf32> to vector<8x8xbf16>
      %cst_167 = arith.constant dense<0.000000e+00> : vector<8x8xf32>
      %205 = tpu.matmul %204, %176, %cst_167 {dimension_numbers = #tpu.dot_dimension_numbers<[1], [0], [0], [1], [0, 0, 1, 1], [], []>} : vector<8x8xbf16>, vector<8x8xbf16>, vector<8x8xf32> -> vector<8x8xf32>
      %206 = arith.addf %203, %205 : vector<8x8xf32>
      %c0_168 = arith.constant 0 : index
      %c0_169 = arith.constant 0 : index
      %207 = vector.load %arg20[%c0_168, %c0_169] : memref<8x8xf32, #tpu.memory_space<vmem>>, vector<8x8xf32>
      tpu.vector_store %arg20[%c0_168, %c0_169], %206 {strides = array<i32>} : memref<8x8xf32, #tpu.memory_space<vmem>>, vector<8x8xf32>,
      %c0_170 = arith.constant 0 : index
      %c0_171 = arith.constant 0 : index
      %208 = vector.load %arg18[%c0_170, %c0_171] : memref<8x1xf32, #tpu.memory_space<vmem>>, vector<8x1xf32>
      tpu.vector_store %arg18[%c0_170, %c0_171], %189 {strides = array<i32>} : memref<8x1xf32, #tpu.memory_space<vmem>>, vector<8x1xf32>,
    }
    %c0_85 = arith.constant 0 : index
    %c0_86 = arith.constant 0 : index
    %88 = vector.load %arg19[%c0_85, %c0_86] : memref<8x1xf32, #tpu.memory_space<vmem>>, vector<8x1xf32>
    %89 = tpu.reciprocal %88 {approx = true} : vector<8x1xf32> -> vector<8x1xf32>
    %c0_87 = arith.constant 0 : index
    %c0_88 = arith.constant 0 : index
    %90 = vector.load %arg20[%c0_87, %c0_88] : memref<8x8xf32, #tpu.memory_space<vmem>>, vector<8x8xf32>
    %91 = vector.broadcast %89 : vector<8x1xf32> to vector<8x8xf32>
    %92 = arith.mulf %90, %91 : vector<8x8xf32>
    %c0_89 = arith.constant 0 : index
    %c16_90 = arith.constant 16 : index
    %93 = vector.load %arg16[%c0_89, %c16_90] : memref<8x32xf32, #tpu.memory_space<vmem>>, vector<8x8xf32>
    tpu.vector_store %arg16[%c0_89, %c16_90], %92 {strides = array<i32>} : memref<8x32xf32, #tpu.memory_space<vmem>>, vector<8x8xf32>,
    %c0_91 = arith.constant 0 : index
    %c24 = arith.constant 24 : index
    %94 = vector.load %arg13[%c0_91, %c24] : memref<8x32xbf16, #tpu.memory_space<vmem>>, vector<8x8xbf16>
    %cst_92 = arith.constant -1.000000e+30 : f32
    %95 = vector.broadcast %cst_92 : f32 to vector<8x1xf32>
    %c0_93 = arith.constant 0 : index
    %c0_94 = arith.constant 0 : index
    %96 = vector.load %arg18[%c0_93, %c0_94] : memref<8x1xf32, #tpu.memory_space<vmem>>, vector<8x1xf32>
    tpu.vector_store %arg18[%c0_93, %c0_94], %95 {strides = array<i32>} : memref<8x1xf32, #tpu.memory_space<vmem>>, vector<8x1xf32>,
    %cst_95 = arith.constant 0.000000e+00 : f32
    %97 = vector.broadcast %cst_95 : f32 to vector<8x1xf32>
    %c0_96 = arith.constant 0 : index
    %c0_97 = arith.constant 0 : index
    %98 = vector.load %arg19[%c0_96, %c0_97] : memref<8x1xf32, #tpu.memory_space<vmem>>, vector<8x1xf32>
    tpu.vector_store %arg19[%c0_96, %c0_97], %97 {strides = array<i32>} : memref<8x1xf32, #tpu.memory_space<vmem>>, vector<8x1xf32>,
    %cst_98 = arith.constant 0.000000e+00 : f32
    %99 = vector.broadcast %cst_98 : f32 to vector<8x8xf32>
    %c0_99 = arith.constant 0 : index
    %c0_100 = arith.constant 0 : index
    %100 = vector.load %arg20[%c0_99, %c0_100] : memref<8x8xf32, #tpu.memory_space<vmem>>, vector<8x8xf32>
    tpu.vector_store %arg20[%c0_99, %c0_100], %99 {strides = array<i32>} : memref<8x8xf32, #tpu.memory_space<vmem>>, vector<8x8xf32>,
    %c0_i32_101 = arith.constant 0 : i32
    %101 = arith.subi %36, %c0_i32_101 : i32
    %c1_i32_102 = arith.constant 1 : i32
    %c1_i32_103 = arith.constant 1 : i32
    %102 = arith.subi %c1_i32_102, %c1_i32_103 : i32
    %103 = arith.addi %101, %102 : i32
    %c1_i32_104 = arith.constant 1 : i32
    %104 = arith.divsi %103, %c1_i32_104 : i32
    %c1_i32_105 = arith.constant 1 : i32
    %c0_i32_106 = arith.constant 0 : i32
    %c0_i32_107 = arith.constant 0 : i32
    %105 = arith.subi %104, %c0_i32_107 : i32
    %106 = arith.addi %c0_i32_107, %105 : i32
    %c1_i32_108 = arith.constant 1 : i32
    scf.for %arg21 = %c0_i32_107 to %106 step %c1_i32_108  : i32 {
      %169 = arith.muli %arg21, %c1_i32_105 : i32
      %170 = arith.addi %c0_i32_106, %169 : i32
      %c8_i32_152 = arith.constant 8 : i32
      %171 = arith.muli %170, %c8_i32_152 : i32
      %172 = tpu.assume_multiple %171, 8 : i32
      %173 = arith.index_cast %172 : i32 to index
      %c24_153 = arith.constant 24 : index
      %174 = vector.load %arg14[%173, %c24_153] : memref<8x32xbf16, #tpu.memory_space<vmem>>, vector<8x8xbf16>
      %175 = arith.index_cast %172 : i32 to index
      %c24_154 = arith.constant 24 : index
      %176 = vector.load %arg15[%175, %c24_154] : memref<8x32xbf16, #tpu.memory_space<vmem>>, vector<8x8xbf16>
      %cst_155 = arith.constant dense<0.000000e+00> : vector<8x8xf32>
      %177 = tpu.matmul %94, %174, %cst_155 {dimension_numbers = #tpu.dot_dimension_numbers<[1], [1], [0], [0], [0, 0, 1, 0], [], []>} : vector<8x8xbf16>, vector<8x8xbf16>, vector<8x8xf32> -> vector<8x8xf32>
      %cst_156 = arith.constant 0.353553385 : f32
      %178 = vector.broadcast %cst_156 : f32 to vector<8x8xf32>
      %179 = arith.mulf %177, %178 : vector<8x8xf32>
      %180 = arith.cmpi eq, %170, %arg1 : i32
      %181 = arith.extui %180 : i1 to i32
      %182 = arith.sitofp %181 : i32 to f32
      %183 = vector.broadcast %182 : f32 to vector<8x8xf32>
      %184 = arith.mulf %35, %183 : vector<8x8xf32>
      %185 = arith.addf %179, %184 : vector<8x8xf32>
      %c0_157 = arith.constant 0 : index
      %c0_158 = arith.constant 0 : index
      %186 = vector.load %arg18[%c0_157, %c0_158] : memref<8x1xf32, #tpu.memory_space<vmem>>, vector<8x1xf32>
      %cst_159 = arith.constant dense<0xFF800000> : vector<8xf32>
      %187 = vector.multi_reduction <maximumf>, %185, %cst_159 [1] : vector<8x8xf32> to vector<8xf32>
      %188 = vector.shape_cast %187 : vector<8xf32> to vector<8x1xf32>
      %189 = arith.maximumf %186, %188 : vector<8x1xf32>
      %190 = arith.subf %186, %189 : vector<8x1xf32>
      %191 = math.exp %190 : vector<8x1xf32>
      %192 = vector.broadcast %189 : vector<8x1xf32> to vector<8x8xf32>
      %193 = arith.subf %185, %192 : vector<8x8xf32>
      %194 = math.exp %193 : vector<8x8xf32>
      %c0_160 = arith.constant 0 : index
      %c0_161 = arith.constant 0 : index
      %195 = vector.load %arg19[%c0_160, %c0_161] : memref<8x1xf32, #tpu.memory_space<vmem>>, vector<8x1xf32>
      %196 = arith.mulf %191, %195 : vector<8x1xf32>
      %cst_162 = arith.constant dense<0.000000e+00> : vector<8xf32>
      %197 = vector.multi_reduction <add>, %194, %cst_162 [1] : vector<8x8xf32> to vector<8xf32>
      %198 = vector.shape_cast %197 : vector<8xf32> to vector<8x1xf32>
      %199 = arith.addf %196, %198 : vector<8x1xf32>
      %c0_163 = arith.constant 0 : index
      %c0_164 = arith.constant 0 : index
      %200 = vector.load %arg19[%c0_163, %c0_164] : memref<8x1xf32, #tpu.memory_space<vmem>>, vector<8x1xf32>
      tpu.vector_store %arg19[%c0_163, %c0_164], %199 {strides = array<i32>} : memref<8x1xf32, #tpu.memory_space<vmem>>, vector<8x1xf32>,
      %c0_165 = arith.constant 0 : index
      %c0_166 = arith.constant 0 : index
      %201 = vector.load %arg20[%c0_165, %c0_166] : memref<8x8xf32, #tpu.memory_space<vmem>>, vector<8x8xf32>
      %202 = vector.broadcast %191 : vector<8x1xf32> to vector<8x8xf32>
      %203 = arith.mulf %202, %201 : vector<8x8xf32>
      %204 = arith.truncf %194 : vector<8x8xf32> to vector<8x8xbf16>
      %cst_167 = arith.constant dense<0.000000e+00> : vector<8x8xf32>
      %205 = tpu.matmul %204, %176, %cst_167 {dimension_numbers = #tpu.dot_dimension_numbers<[1], [0], [0], [1], [0, 0, 1, 1], [], []>} : vector<8x8xbf16>, vector<8x8xbf16>, vector<8x8xf32> -> vector<8x8xf32>
      %206 = arith.addf %203, %205 : vector<8x8xf32>
      %c0_168 = arith.constant 0 : index
      %c0_169 = arith.constant 0 : index
      %207 = vector.load %arg20[%c0_168, %c0_169] : memref<8x8xf32, #tpu.memory_space<vmem>>, vector<8x8xf32>
      tpu.vector_store %arg20[%c0_168, %c0_169], %206 {strides = array<i32>} : memref<8x8xf32, #tpu.memory_space<vmem>>, vector<8x8xf32>,
      %c0_170 = arith.constant 0 : index
      %c0_171 = arith.constant 0 : index
      %208 = vector.load %arg18[%c0_170, %c0_171] : memref<8x1xf32, #tpu.memory_space<vmem>>, vector<8x1xf32>
      tpu.vector_store %arg18[%c0_170, %c0_171], %189 {strides = array<i32>} : memref<8x1xf32, #tpu.memory_space<vmem>>, vector<8x1xf32>,
    }
    %c0_109 = arith.constant 0 : index
    %c0_110 = arith.constant 0 : index
    %107 = vector.load %arg19[%c0_109, %c0_110] : memref<8x1xf32, #tpu.memory_space<vmem>>, vector<8x1xf32>
    %108 = tpu.reciprocal %107 {approx = true} : vector<8x1xf32> -> vector<8x1xf32>
    %c0_111 = arith.constant 0 : index
    %c0_112 = arith.constant 0 : index
    %109 = vector.load %arg20[%c0_111, %c0_112] : memref<8x8xf32, #tpu.memory_space<vmem>>, vector<8x8xf32>
    %110 = vector.broadcast %108 : vector<8x1xf32> to vector<8x8xf32>
    %111 = arith.mulf %109, %110 : vector<8x8xf32>
    %c0_113 = arith.constant 0 : index
    %c24_114 = arith.constant 24 : index
    %112 = vector.load %arg16[%c0_113, %c24_114] : memref<8x32xf32, #tpu.memory_space<vmem>>, vector<8x8xf32>
    tpu.vector_store %arg16[%c0_113, %c24_114], %111 {strides = array<i32>} : memref<8x32xf32, #tpu.memory_space<vmem>>, vector<8x8xf32>,
    %c0_115 = arith.constant 0 : index
    %c0_116 = arith.constant 0 : index
    %113 = vector.load %arg16[%c0_115, %c0_116] : memref<8x32xf32, #tpu.memory_space<vmem>>, vector<8x32xf32>
    %114 = arith.addf %113, %2 : vector<8x32xf32>
    %c0_117 = arith.constant 0 : index
    %c0_118 = arith.constant 0 : index
    %115 = vector.load %arg16[%c0_117, %c0_118] : memref<8x32xf32, #tpu.memory_space<vmem>>, vector<8x32xf32>
    tpu.vector_store %arg16[%c0_117, %c0_118], %114 {strides = array<i32>} : memref<8x32xf32, #tpu.memory_space<vmem>>, vector<8x32xf32>,
    %c0_119 = arith.constant 0 : index
    %c0_120 = arith.constant 0 : index
    %116 = vector.load %arg16[%c0_119, %c0_120] : memref<8x32xf32, #tpu.memory_space<vmem>>, vector<8x32xf32>
    %117 = arith.mulf %116, %116 : vector<8x32xf32>
    %cst_121 = arith.constant dense<0.000000e+00> : vector<8xf32>
    %118 = vector.multi_reduction <add>, %117, %cst_121 [1] : vector<8x32xf32> to vector<8xf32>
    %119 = vector.shape_cast %118 : vector<8xf32> to vector<8x1xf32>
    %cst_122 = arith.constant 3.200000e+01 : f32
    %120 = vector.broadcast %cst_122 : f32 to vector<8x1xf32>
    %121 = arith.divf %119, %120 : vector<8x1xf32>
    %cst_123 = arith.constant 9.99999997E-7 : f32
    %122 = vector.broadcast %cst_123 : f32 to vector<8x1xf32>
    %123 = arith.addf %121, %122 : vector<8x1xf32>
    %124 = math.rsqrt %123 : vector<8x1xf32>
    %125 = vector.broadcast %124 : vector<8x1xf32> to vector<8x32xf32>
    %126 = arith.mulf %116, %125 : vector<8x32xf32>
    %127 = arith.truncf %126 : vector<8x32xf32> to vector<8x32xbf16>
    %c0_124 = arith.constant 0 : index
    %c0_125 = arith.constant 0 : index
    %128 = vector.load %arg17[%c0_124, %c0_125] : memref<8x32xbf16, #tpu.memory_space<vmem>>, vector<8x32xbf16>
    tpu.vector_store %arg17[%c0_124, %c0_125], %127 {strides = array<i32>} : memref<8x32xbf16, #tpu.memory_space<vmem>>, vector<8x32xbf16>,
    %c0_i32_126 = arith.constant 0 : i32
    %c1_i32_127 = arith.constant 1 : i32
    %129 = arith.muli %c0_i32_126, %c1_i32_127 : i32
    %c0_i32_128 = arith.constant 0 : i32
    %130 = arith.addi %c0_i32_128, %129 : i32
    %c128_i32 = arith.constant 128 : i32
    %131 = arith.muli %130, %c128_i32 : i32
    %132 = tpu.assume_multiple %131, 128 : i32
    %c0_129 = arith.constant 0 : index
    %c0_130 = arith.constant 0 : index
    %133 = vector.load %arg17[%c0_129, %c0_130] : memref<8x32xbf16, #tpu.memory_space<vmem>>, vector<8x32xbf16>
    %c0_131 = arith.constant 0 : index
    %134 = arith.index_cast %132 : i32 to index
    %135 = vector.load %arg6[%c0_131, %134] : memref<32x128xbf16, #tpu.memory_space<vmem>>, vector<32x128xbf16>
    %cst_132 = arith.constant dense<0.000000e+00> : vector<8x128xf32>
    %136 = tpu.matmul %133, %135, %cst_132 {dimension_numbers = #tpu.dot_dimension_numbers<[1], [0], [0], [1], [0, 0, 1, 1], [], []>} : vector<8x32xbf16>, vector<32x128xbf16>, vector<8x128xf32> -> vector<8x128xf32>
    %c0_133 = arith.constant 0 : index
    %137 = arith.index_cast %132 : i32 to index
    %138 = vector.load %arg7[%c0_133, %137] : memref<1x128xf32, #tpu.memory_space<vmem>>, vector<1x128xf32>
    %139 = vector.broadcast %138 : vector<1x128xf32> to vector<8x128xf32>
    %140 = arith.addf %136, %139 : vector<8x128xf32>
    %c0_134 = arith.constant 0 : index
    %141 = arith.index_cast %132 : i32 to index
    %142 = vector.load %arg10[%c0_134, %141] : memref<32x128xbf16, #tpu.memory_space<vmem>>, vector<32x128xbf16>
    %cst_135 = arith.constant dense<0.000000e+00> : vector<8x128xf32>
    %143 = tpu.matmul %133, %142, %cst_135 {dimension_numbers = #tpu.dot_dimension_numbers<[1], [0], [0], [1], [0, 0, 1, 1], [], []>} : vector<8x32xbf16>, vector<32x128xbf16>, vector<8x128xf32> -> vector<8x128xf32>
    %c0_136 = arith.constant 0 : index
    %144 = arith.index_cast %132 : i32 to index
    %145 = vector.load %arg11[%c0_136, %144] : memref<1x128xf32, #tpu.memory_space<vmem>>, vector<1x128xf32>
    %146 = vector.broadcast %145 : vector<1x128xf32> to vector<8x128xf32>
    %147 = arith.addf %143, %146 : vector<8x128xf32>
    %148 = arith.negf %140 : vector<8x128xf32>
    %149 = math.exp %148 : vector<8x128xf32>
    %cst_137 = arith.constant 1.000000e+00 : f32
    %150 = vector.broadcast %cst_137 : f32 to vector<8x128xf32>
    %151 = arith.addf %150, %149 : vector<8x128xf32>
    %152 = arith.divf %150, %151 : vector<8x128xf32>
    %153 = arith.mulf %140, %152 : vector<8x128xf32>
    %154 = arith.mulf %153, %147 : vector<8x128xf32>
    %c0_138 = arith.constant 0 : index
    %c0_139 = arith.constant 0 : index
    %155 = vector.load %arg16[%c0_138, %c0_139] : memref<8x32xf32, #tpu.memory_space<vmem>>, vector<8x32xf32>
    %156 = arith.truncf %154 : vector<8x128xf32> to vector<8x128xbf16>
    %157 = arith.index_cast %132 : i32 to index
    %c0_140 = arith.constant 0 : index
    %158 = vector.load %arg8[%157, %c0_140] : memref<128x32xbf16, #tpu.memory_space<vmem>>, vector<128x32xbf16>
    %cst_141 = arith.constant dense<0.000000e+00> : vector<8x32xf32>
    %159 = tpu.matmul %156, %158, %cst_141 {dimension_numbers = #tpu.dot_dimension_numbers<[1], [0], [0], [1], [0, 0, 1, 1], [], []>} : vector<8x128xbf16>, vector<128x32xbf16>, vector<8x32xf32> -> vector<8x32xf32>
    %160 = arith.addf %155, %159 : vector<8x32xf32>
    %c0_142 = arith.constant 0 : index
    %c0_143 = arith.constant 0 : index
    %161 = vector.load %arg16[%c0_142, %c0_143] : memref<8x32xf32, #tpu.memory_space<vmem>>, vector<8x32xf32>
    tpu.vector_store %arg16[%c0_142, %c0_143], %160 {strides = array<i32>} : memref<8x32xf32, #tpu.memory_space<vmem>>, vector<8x32xf32>,
    %c1_i32_144 = arith.constant 1 : i32
    %c0_145 = arith.constant 0 : index
    %c0_146 = arith.constant 0 : index
    %162 = vector.load %arg16[%c0_145, %c0_146] : memref<8x32xf32, #tpu.memory_space<vmem>>, vector<8x32xf32>
    %c0_147 = arith.constant 0 : index
    %c0_148 = arith.constant 0 : index
    %163 = vector.load %arg9[%c0_147, %c0_148] : memref<1x32xf32, #tpu.memory_space<vmem>>, vector<1x32xf32>
    %164 = vector.broadcast %163 : vector<1x32xf32> to vector<8x32xf32>
    %165 = arith.addf %162, %164 : vector<8x32xf32>
    %c0_149 = arith.constant 0 : index
    %c0_150 = arith.constant 0 : index
    %c0_151 = arith.constant 0 : index
    %166 = vector.load %arg12[%c0_149, %c0_150, %c0_151] : memref<1x8x32xf32, #tpu.memory_space<vmem>>, vector<1x8x32xf32>
    %167 = vector.shape_cast %166 : vector<1x8x32xf32> to vector<8x32xf32>
    %168 = vector.shape_cast %165 : vector<8x32xf32> to vector<1x8x32xf32>
    tpu.vector_store %arg12[%c0_149, %c0_150, %c0_151], %168 {strides = array<i32>} : memref<1x8x32xf32, #tpu.memory_space<vmem>>, vector<1x8x32xf32>,
    return
  }
  func.func @transform_0(%arg0: i32, %arg1: i32) -> (i32, i32, i32) {
    %c0_i32 = arith.constant 0 : i32
    %c0_i32_0 = arith.constant 0 : i32
    return %arg0, %arg1, %c0_i32 : i32, i32, i32
  }
  func.func @transform_1(%arg0: i32, %arg1: i32) -> (i32, i32) {
    %c0_i32 = arith.constant 0 : i32
    %c0_i32_0 = arith.constant 0 : i32
    %c0_i32_1 = arith.constant 0 : i32
    return %c0_i32, %c0_i32_0 : i32, i32
  }
  func.func @transform_2(%arg0: i32, %arg1: i32) -> (i32, i32) {
    %c0_i32 = arith.constant 0 : i32
    %c0_i32_0 = arith.constant 0 : i32
    %c0_i32_1 = arith.constant 0 : i32
    return %c0_i32, %c0_i32_0 : i32, i32
  }
  func.func @transform_3(%arg0: i32, %arg1: i32) -> (i32, i32) {
    %c0_i32 = arith.constant 0 : i32
    %c0_i32_0 = arith.constant 0 : i32
    %c0_i32_1 = arith.constant 0 : i32
    return %c0_i32, %c0_i32_0 : i32, i32
  }
  func.func @transform_4(%arg0: i32, %arg1: i32) -> (i32, i32) {
    %c0_i32 = arith.constant 0 : i32
    %c0_i32_0 = arith.constant 0 : i32
    %c0_i32_1 = arith.constant 0 : i32
    return %c0_i32, %c0_i32_0 : i32, i32
  }
  func.func @transform_5(%arg0: i32, %arg1: i32) -> (i32, i32) {
    %c0_i32 = arith.constant 0 : i32
    %c0_i32_0 = arith.constant 0 : i32
    %c0_i32_1 = arith.constant 0 : i32
    return %c0_i32, %c0_i32_0 : i32, i32
  }
  func.func @transform_6(%arg0: i32, %arg1: i32) -> (i32, i32) {
    %c0_i32 = arith.constant 0 : i32
    %c0_i32_0 = arith.constant 0 : i32
    %c0_i32_1 = arith.constant 0 : i32
    return %c0_i32, %c0_i32_0 : i32, i32
  }
  func.func @transform_7(%arg0: i32, %arg1: i32) -> (i32, i32) {
    %c0_i32 = arith.constant 0 : i32
    %c0_i32_0 = arith.constant 0 : i32
    %c0_i32_1 = arith.constant 0 : i32
    return %c0_i32, %c0_i32_0 : i32, i32
  }
  func.func @transform_8(%arg0: i32, %arg1: i32) -> (i32, i32) {
    %c0_i32 = arith.constant 0 : i32
    %c0_i32_0 = arith.constant 0 : i32
    %c0_i32_1 = arith.constant 0 : i32
    return %c0_i32, %c0_i32_0 : i32, i32
  }
  func.func @transform_9(%arg0: i32, %arg1: i32) -> (i32, i32) {
    %c0_i32 = arith.constant 0 : i32
    %c0_i32_0 = arith.constant 0 : i32
    %c0_i32_1 = arith.constant 0 : i32
    return %c0_i32, %c0_i32_0 : i32, i32
  }
  func.func @transform_10(%arg0: i32, %arg1: i32) -> (i32, i32, i32) {
    %c0_i32 = arith.constant 0 : i32
    %c0_i32_0 = arith.constant 0 : i32
    return %arg0, %arg1, %c0_i32 : i32, i32, i32
  }
}

</mosaic_0001>

<llo_original>
// kernel: tpu_custom_call.1
$region0: #{tpu_custom_call.1}
  #allocation0 [shape = 'u32[]', space=smem, size = 0x4, offset = 0x4, fixed_abs, tag = 'smem constant byte address 0x4 - core index']
  #allocation1 [shape = 'u32[144,128]{1,0:T(1,128)}', space=vmem, size = 0x12000, scoped, tag = 'internal scratch']
  #allocation2 [shape = 'bf16[8,32]{1,0:T(8,128)(2,1)}', space=vmem, size = 0x800, scoped, tag = 'scratch operand']
  #allocation3 [shape = 'bf16[8,32]{1,0:T(8,128)(2,1)}', space=vmem, size = 0x800, scoped, tag = 'scratch operand']
  #allocation4 [shape = 'bf16[8,32]{1,0:T(8,128)(2,1)}', space=vmem, size = 0x800, scoped, tag = 'scratch operand']
  #allocation5 [shape = 'f32[8,32]{1,0:T(8,128)}', space=vmem, size = 0x1000, scoped, tag = 'scratch operand']
  #allocation6 [shape = 'bf16[8,32]{1,0:T(8,128)(2,1)}', space=vmem, size = 0x800, scoped, tag = 'scratch operand']
  #allocation7 [shape = 'f32[8,1]{1,0:T(8,128)}', space=vmem, size = 0x1000, scoped, tag = 'scratch operand']
  #allocation8 [shape = 'f32[8,1]{1,0:T(8,128)}', space=vmem, size = 0x1000, scoped, tag = 'scratch operand']
  #allocation9 [shape = 'f32[8,8]{1,0:T(8,128)}', space=vmem, size = 0x1000, scoped, tag = 'scratch operand']
  %s0 = inlined_call_operand.hbm [shape: bf16[2,8,32], index: 0, kind: input, shape index: {}]
  %s1 = inlined_call_operand.vmem [shape: bf16[32,32], index: 1, kind: input, shape index: {}]
  %s2 = inlined_call_operand.vmem [shape: bf16[32,32], index: 2, kind: input, shape index: {}]
  %s3 = inlined_call_operand.vmem [shape: bf16[32,32], index: 3, kind: input, shape index: {}]
  %s4 = inlined_call_operand.vmem [shape: bf16[32,128], index: 4, kind: input, shape index: {}]
  %s5 = inlined_call_operand.vmem [shape: f32[1,128], index: 5, kind: input, shape index: {}]
  %s6 = inlined_call_operand.vmem [shape: bf16[128,32], index: 6, kind: input, shape index: {}]
  %s7 = inlined_call_operand.vmem [shape: f32[1,32], index: 7, kind: input, shape index: {}]
  %s8 = inlined_call_operand.vmem [shape: bf16[32,128], index: 8, kind: input, shape index: {}]
  %s9 = inlined_call_operand.vmem [shape: f32[1,128], index: 9, kind: input, shape index: {}]
  %s10 = inlined_call_operand.hbm [shape: f32[2,8,32], index: 10, kind: output, shape index: {}]
  %s11 = sld [smem:[#allocation0]]
  $region105: #{tpu_custom_call.1} parent=0
    _
  %s13 = ssub.s32 1, %s11
  %s14 = scalar_select 0, %s13, %s11
  $region1: #{tpu_custom_call.1} parent=0
    #allocation10 [shape = 'u8[4096]{0}', space=vmem, size = 0x1000, scoped, tag = 'input window, operand 0']
    #allocation11 [shape = 's32[2]{0}', space=sflag, size = 0x8, scoped, tag = 'scoped memory for tpu_custom_call.1']
    #allocation12 [shape = 's32[2]{0}', space=sflag, size = 0x8, scoped, tag = 'scoped memory for tpu_custom_call.1']
    #allocation13 [shape = 'u8[8192]{0}', space=vmem, size = 0x2000, scoped, tag = 'output window, operand 0']
    %15 = vsyncpa [#allocation11], 0
    %s16 = scalar_lea.sflag [#allocation11], 1
    %17 = vsyncpa %s16, 0
    %18 = vsyncpa [#allocation12], 0
    %s19 = scalar_lea.sflag [#allocation12], 1
    %20 = vsyncpa %s19, 0
    loop: start=0, step=1, limit=4
    $region2: #{tpu_custom_call.1} parent=1 // loop_pre_header
      _
    $region3: #{tpu_custom_call.1} parent=1 // loop_header
      %s22 = sphi 0, %s26
      %p23 = scmp.ge.s32.totalorder %s22, 4
      %s29 = sphi 0, %s41
      %s30 = sphi 0, %s37
      %s31 = sphi 0, %s29
      %s32 = sphi 0, %s30
      %s33 = sphi 0, %s31
      %s34 = sphi 0, %s32
      %s46 = sphi 0, %s48
      %s49 = sphi 0, %s46
      %s50 = sphi 0, %s49
      %s66 = sphi 0, %s50
      %s70 = sphi 0, %s70
      %s72 = sphi 0, %s70
      %s73 = sphi 0, %s72
      %s87 = sphi 0, %s73
      %s91 = sphi 0, %s91
      %s93 = sphi 0, %s91
      %s94 = sphi 0, %s93
      %s108 = sphi 0, %s94
      %s112 = sphi 0, %s112
      %s114 = sphi 0, %s112
      %s115 = sphi 0, %s114
      %s129 = sphi 0, %s115
      %s133 = sphi 0, %s133
      %s135 = sphi 0, %s133
      %s136 = sphi 0, %s135
      %s150 = sphi 0, %s136
      %s154 = sphi 0, %s154
      %s156 = sphi 0, %s154
      %s157 = sphi 0, %s156
      %s171 = sphi 0, %s157
      %s175 = sphi 0, %s175
      %s177 = sphi 0, %s175
      %s178 = sphi 0, %s177
      %s192 = sphi 0, %s178
      %s196 = sphi 0, %s196
      %s198 = sphi 0, %s196
      %s199 = sphi 0, %s198
      %s213 = sphi 0, %s199
      %s217 = sphi 0, %s217
      %s219 = sphi 0, %s217
      %s220 = sphi 0, %s219
      %s234 = sphi 0, %s220
      %s238 = sphi 0, %s238
      %s240 = sphi 0, %s238
      %s241 = sphi 0, %s240
      %s255 = sphi 0, %s241
      %s263 = sphi 0, %s265
      %s266 = sphi 0, %s263
      %s267 = sphi 0, %s266
      %s283 = sphi 0, %s267
    $region4: #{tpu_custom_call.1} parent=1 // loop_header_branch
      %25 = sbr.rel (%p23) target = $region8
    $region5: #{tpu_custom_call.1} parent=1 // loop_body
      %s27 = ssub.s32 %s22, 1
      %s28 = ssub.s32 %s22, 2
      %s35 = sadd.s32 1, %s30
      %p36 = scmp.ge.s32.totalorder %s35, 1
      %s37 = scalar_select %p36, 0, %s35
      %s38 = sadd.s32 1, %s29
      %s39 = scalar_select %p36, %s38, %s29
      %p40 = scmp.ge.s32.totalorder %s39, 2
      %s41 = scalar_select %p40, 0, %s39
      %s42 = ssub.s32 %s29, %s41
      %s43 = ssub.s32 %s30, %s37
      %s44 = sor.u32 %s42, %s43
      %p45 = scmp.eq.s32.totalorder %s44, 0
      %s47 = sadd.s32 %s46, 1
      %s48 = scalar_select %p45, %s46, %s47
      %p51 = pneg %p45
      %p52 = scmp.eq.s32.totalorder %s22, 1
      %p53 = por %p51, %p52
      %p54 = scmp.ne.s32.totalorder %s46, %s49
      %p55 = scmp.eq.s32.totalorder %s22, 0
      %p56 = por %p54, %p55
      %p57 = scmp.ne.s32.totalorder %s46, %s49
      %p58 = scmp.eq.s32.totalorder %s27, 1
      %p59 = por %p57, %p58
      %p60 = scmp.ne.s32.totalorder %s49, %s50
      %p61 = scmp.eq.s32.totalorder %s27, 0
      %p62 = por %p60, %p61
      %p63 = scmp.ne.s32.totalorder %s49, %s50
      %p64 = scmp.eq.s32.totalorder %s28, 1
      %p65 = por %p63, %p64
      %p67 = scmp.ne.s32.totalorder %s50, %s66
      %p68 = scmp.eq.s32.totalorder %s28, 0
      %p69 = por %p67, %p68
      %s71 = sadd.s32 %s70, 1
      %p74 = scmp.eq.s32.totalorder %s22, 1
      %p75 = scmp.ne.s32.totalorder %s70, %s72
      %p76 = scmp.eq.s32.totalorder %s22, 0
      %p77 = por %p75, %p76
      %p78 = scmp.ne.s32.totalorder %s70, %s72
      %p79 = scmp.eq.s32.totalorder %s27, 1
      %p80 = por %p78, %p79
      %p81 = scmp.ne.s32.totalorder %s72, %s73
      %p82 = scmp.eq.s32.totalorder %s27, 0
      %p83 = por %p81, %p82
      %p84 = scmp.ne.s32.totalorder %s72, %s73
      %p85 = scmp.eq.s32.totalorder %s28, 1
      %p86 = por %p84, %p85
      %p88 = scmp.ne.s32.totalorder %s73, %s87
      %p89 = scmp.eq.s32.totalorder %s28, 0
      %p90 = por %p88, %p89
      %s92 = sadd.s32 %s91, 1
      %p95 = scmp.eq.s32.totalorder %s22, 1
      %p96 = scmp.ne.s32.totalorder %s91, %s93
      %p97 = scmp.eq.s32.totalorder %s22, 0
      %p98 = por %p96, %p97
      %p99 = scmp.ne.s32.totalorder %s91, %s93
      %p100 = scmp.eq.s32.totalorder %s27, 1
      %p101 = por %p99, %p100
      %p102 = scmp.ne.s32.totalorder %s93, %s94
      %p103 = scmp.eq.s32.totalorder %s27, 0
      %p104 = por %p102, %p103
      %p105 = scmp.ne.s32.totalorder %s93, %s94
      %p106 = scmp.eq.s32.totalorder %s28, 1
      %p107 = por %p105, %p106
      %p109 = scmp.ne.s32.totalorder %s94, %s108
      %p110 = scmp.eq.s32.totalorder %s28, 0
      %p111 = por %p109, %p110
      %s113 = sadd.s32 %s112, 1
      %p116 = scmp.eq.s32.totalorder %s22, 1
      %p117 = scmp.ne.s32.totalorder %s112, %s114
      %p118 = scmp.eq.s32.totalorder %s22, 0
      %p119 = por %p117, %p118
      %p120 = scmp.ne.s32.totalorder %s112, %s114
      %p121 = scmp.eq.s32.totalorder %s27, 1
      %p122 = por %p120, %p121
      %p123 = scmp.ne.s32.totalorder %s114, %s115
      %p124 = scmp.eq.s32.totalorder %s27, 0
      %p125 = por %p123, %p124
      %p126 = scmp.ne.s32.totalorder %s114, %s115
      %p127 = scmp.eq.s32.totalorder %s28, 1
      %p128 = por %p126, %p127
      %p130 = scmp.ne.s32.totalorder %s115, %s129
      %p131 = scmp.eq.s32.totalorder %s28, 0
      %p132 = por %p130, %p131
      %s134 = sadd.s32 %s133, 1
      %p137 = scmp.eq.s32.totalorder %s22, 1
      %p138 = scmp.ne.s32.totalorder %s133, %s135
      %p139 = scmp.eq.s32.totalorder %s22, 0
      %p140 = por %p138, %p139
      %p141 = scmp.ne.s32.totalorder %s133, %s135
      %p142 = scmp.eq.s32.totalorder %s27, 1
      %p143 = por %p141, %p142
      %p144 = scmp.ne.s32.totalorder %s135, %s136
      %p145 = scmp.eq.s32.totalorder %s27, 0
      %p146 = por %p144, %p145
      %p147 = scmp.ne.s32.totalorder %s135, %s136
      %p148 = scmp.eq.s32.totalorder %s28, 1
      %p149 = por %p147, %p148
      %p151 = scmp.ne.s32.totalorder %s136, %s150
      %p152 = scmp.eq.s32.totalorder %s28, 0
      %p153 = por %p151, %p152
      %s155 = sadd.s32 %s154, 1
      %p158 = scmp.eq.s32.totalorder %s22, 1
      %p159 = scmp.ne.s32.totalorder %s154, %s156
      %p160 = scmp.eq.s32.totalorder %s22, 0
      %p161 = por %p159, %p160
      %p162 = scmp.ne.s32.totalorder %s154, %s156
      %p163 = scmp.eq.s32.totalorder %s27, 1
      %p164 = por %p162, %p163
      %p165 = scmp.ne.s32.totalorder %s156, %s157
      %p166 = scmp.eq.s32.totalorder %s27, 0
      %p167 = por %p165, %p166
      %p168 = scmp.ne.s32.totalorder %s156, %s157
      %p169 = scmp.eq.s32.totalorder %s28, 1
      %p170 = por %p168, %p169
      %p172 = scmp.ne.s32.totalorder %s157, %s171
      %p173 = scmp.eq.s32.totalorder %s28, 0
      %p174 = por %p172, %p173
      %s176 = sadd.s32 %s175, 1
      %p179 = scmp.eq.s32.totalorder %s22, 1
      %p180 = scmp.ne.s32.totalorder %s175, %s177
      %p181 = scmp.eq.s32.totalorder %s22, 0
      %p182 = por %p180, %p181
      %p183 = scmp.ne.s32.totalorder %s175, %s177
      %p184 = scmp.eq.s32.totalorder %s27, 1
      %p185 = por %p183, %p184
      %p186 = scmp.ne.s32.totalorder %s177, %s178
      %p187 = scmp.eq.s32.totalorder %s27, 0
      %p188 = por %p186, %p187
      %p189 = scmp.ne.s32.totalorder %s177, %s178
      %p190 = scmp.eq.s32.totalorder %s28, 1
      %p191 = por %p189, %p190
      %p193 = scmp.ne.s32.totalorder %s178, %s192
      %p194 = scmp.eq.s32.totalorder %s28, 0
      %p195 = por %p193, %p194
      %s197 = sadd.s32 %s196, 1
      %p200 = scmp.eq.s32.totalorder %s22, 1
      %p201 = scmp.ne.s32.totalorder %s196, %s198
      %p202 = scmp.eq.s32.totalorder %s22, 0
      %p203 = por %p201, %p202
      %p204 = scmp.ne.s32.totalorder %s196, %s198
      %p205 = scmp.eq.s32.totalorder %s27, 1
      %p206 = por %p204, %p205
      %p207 = scmp.ne.s32.totalorder %s198, %s199
      %p208 = scmp.eq.s32.totalorder %s27, 0
      %p209 = por %p207, %p208
      %p210 = scmp.ne.s32.totalorder %s198, %s199
      %p211 = scmp.eq.s32.totalorder %s28, 1
      %p212 = por %p210, %p211
      %p214 = scmp.ne.s32.totalorder %s199, %s213
      %p215 = scmp.eq.s32.totalorder %s28, 0
      %p216 = por %p214, %p215
      %s218 = sadd.s32 %s217, 1
      %p221 = scmp.eq.s32.totalorder %s22, 1
      %p222 = scmp.ne.s32.totalorder %s217, %s219
      %p223 = scmp.eq.s32.totalorder %s22, 0
      %p224 = por %p222, %p223
      %p225 = scmp.ne.s32.totalorder %s217, %s219
      %p226 = scmp.eq.s32.totalorder %s27, 1
      %p227 = por %p225, %p226
      %p228 = scmp.ne.s32.totalorder %s219, %s220
      %p229 = scmp.eq.s32.totalorder %s27, 0
      %p230 = por %p228, %p229
      %p231 = scmp.ne.s32.totalorder %s219, %s220
      %p232 = scmp.eq.s32.totalorder %s28, 1
      %p233 = por %p231, %p232
      %p235 = scmp.ne.s32.totalorder %s220, %s234
      %p236 = scmp.eq.s32.totalorder %s28, 0
      %p237 = por %p235, %p236
      %s239 = sadd.s32 %s238, 1
      %p242 = scmp.eq.s32.totalorder %s22, 1
      %p243 = scmp.ne.s32.totalorder %s238, %s240
      %p244 = scmp.eq.s32.totalorder %s22, 0
      %p245 = por %p243, %p244
      %p246 = scmp.ne.s32.totalorder %s238, %s240
      %p247 = scmp.eq.s32.totalorder %s27, 1
      %p248 = por %p246, %p247
      %p249 = scmp.ne.s32.totalorder %s240, %s241
      %p250 = scmp.eq.s32.totalorder %s27, 0
      %p251 = por %p249, %p250
      %p252 = scmp.ne.s32.totalorder %s240, %s241
      %p253 = scmp.eq.s32.totalorder %s28, 1
      %p254 = por %p252, %p253
      %p256 = scmp.ne.s32.totalorder %s241, %s255
      %p257 = scmp.eq.s32.totalorder %s28, 0
      %p258 = por %p256, %p257
      %s259 = ssub.s32 %s29, %s41
      %s260 = ssub.s32 %s30, %s37
      %s261 = sor.u32 %s259, %s260
      %p262 = scmp.eq.s32.totalorder %s261, 0
      %s264 = sadd.s32 %s263, 1
      %s265 = scalar_select %p262, %s263, %s264
      %p268 = pneg %p262
      %p269 = scmp.eq.s32.totalorder %s22, 1
      %p270 = por %p268, %p269
      %p271 = scmp.ne.s32.totalorder %s263, %s266
      %p272 = scmp.eq.s32.totalorder %s22, 0
      %p273 = por %p271, %p272
      %p274 = scmp.ne.s32.totalorder %s263, %s266
      %p275 = scmp.eq.s32.totalorder %s27, 1
      %p276 = por %p274, %p275
      %p277 = scmp.ne.s32.totalorder %s266, %s267
      %p278 = scmp.eq.s32.totalorder %s27, 0
      %p279 = por %p277, %p278
      %p280 = scmp.ne.s32.totalorder %s266, %s267
      %p281 = scmp.eq.s32.totalorder %s28, 1
      %p282 = por %p280, %p281
      %p284 = scmp.ne.s32.totalorder %s267, %s283
      %p285 = scmp.eq.s32.totalorder %s28, 0
      %p286 = por %p284, %p285
      %p287 = scmp.le.s32.totalorder 1, %s22
      %p288 = scmp.lt.s32.totalorder %s22, 3
      %p289 = pnand %p287, %p288
      %p290 = pneg %p289
      // Predicated region
      $region9: #{tpu_custom_call.1} parent=5 // pred_check
        _
      $region10: #{tpu_custom_call.1} parent=5 // pred_check_branch
        %292 = sbr.rel (%p289) target = $region12
      $region11: #{tpu_custom_call.1} parent=5 // pred_region
        %s293 = ssub.s32 %s22, 1
        // Predicated region
        $region13: #{tpu_custom_call.1} parent=11 // pred_check
          %p294 = pneg %p83
        $region14: #{tpu_custom_call.1} parent=11 // pred_check_branch
          %296 = sbr.rel (%p294) target = $region16
        $region15: #{tpu_custom_call.1} parent=11 // pred_region
          _
        $region16: #{tpu_custom_call.1} parent=11 // pred_fallthru
          _
        // Predicated region
        $region17: #{tpu_custom_call.1} parent=11 // pred_check
          %p297 = pneg %p104
        $region18: #{tpu_custom_call.1} parent=11 // pred_check_branch
          %299 = sbr.rel (%p297) target = $region20
        $region19: #{tpu_custom_call.1} parent=11 // pred_region
          _
        $region20: #{tpu_custom_call.1} parent=11 // pred_fallthru
          _
        // Predicated region
        $region21: #{tpu_custom_call.1} parent=11 // pred_check
          %p300 = pneg %p125
        $region22: #{tpu_custom_call.1} parent=11 // pred_check_branch
          %302 = sbr.rel (%p300) target = $region24
        $region23: #{tpu_custom_call.1} parent=11 // pred_region
          _
        $region24: #{tpu_custom_call.1} parent=11 // pred_fallthru
          _
        // Predicated region
        $region25: #{tpu_custom_call.1} parent=11 // pred_check
          %p303 = pneg %p146
        $region26: #{tpu_custom_call.1} parent=11 // pred_check_branch
          %305 = sbr.rel (%p303) target = $region28
        $region27: #{tpu_custom_call.1} parent=11 // pred_region
          _
        $region28: #{tpu_custom_call.1} parent=11 // pred_fallthru
          _
        // Predicated region
        $region29: #{tpu_custom_call.1} parent=11 // pred_check
          %p306 = pneg %p167
        $region30: #{tpu_custom_call.1} parent=11 // pred_check_branch
          %308 = sbr.rel (%p306) target = $region32
        $region31: #{tpu_custom_call.1} parent=11 // pred_region
          _
        $region32: #{tpu_custom_call.1} parent=11 // pred_fallthru
          _
        // Predicated region
        $region33: #{tpu_custom_call.1} parent=11 // pred_check
          %p309 = pneg %p188
        $region34: #{tpu_custom_call.1} parent=11 // pred_check_branch
          %311 = sbr.rel (%p309) target = $region36
        $region35: #{tpu_custom_call.1} parent=11 // pred_region
          _
        $region36: #{tpu_custom_call.1} parent=11 // pred_fallthru
          _
        // Predicated region
        $region37: #{tpu_custom_call.1} parent=11 // pred_check
          %p312 = pneg %p209
        $region38: #{tpu_custom_call.1} parent=11 // pred_check_branch
          %314 = sbr.rel (%p312) target = $region40
        $region39: #{tpu_custom_call.1} parent=11 // pred_region
          _
        $region40: #{tpu_custom_call.1} parent=11 // pred_fallthru
          _
        // Predicated region
        $region41: #{tpu_custom_call.1} parent=11 // pred_check
          %p315 = pneg %p230
        $region42: #{tpu_custom_call.1} parent=11 // pred_check_branch
          %317 = sbr.rel (%p315) target = $region44
        $region43: #{tpu_custom_call.1} parent=11 // pred_region
          _
        $region44: #{tpu_custom_call.1} parent=11 // pred_fallthru
          _
        // Predicated region
        $region45: #{tpu_custom_call.1} parent=11 // pred_check
          %p318 = pneg %p251
        $region46: #{tpu_custom_call.1} parent=11 // pred_check_branch
          %320 = sbr.rel (%p318) target = $region48
        $region47: #{tpu_custom_call.1} parent=11 // pred_region
          _
        $region48: #{tpu_custom_call.1} parent=11 // pred_fallthru
          _
      $region12: #{tpu_custom_call.1} parent=5 // pred_fallthru
        _
      %p321 = scmp.lt.s32.totalorder %s22, 2
      // Predicated region
      $region49: #{tpu_custom_call.1} parent=5 // pred_check
        %p322 = pneg %p321
      $region50: #{tpu_custom_call.1} parent=5 // pred_check_branch
        %324 = sbr.rel (%p322) target = $region52
      $region51: #{tpu_custom_call.1} parent=5 // pred_region
        // Predicated region
        $region53: #{tpu_custom_call.1} parent=51 // pred_check
          %p325 = pneg %p56
        $region54: #{tpu_custom_call.1} parent=51 // pred_check_branch
          %327 = sbr.rel (%p325) target = $region56
        $region55: #{tpu_custom_call.1} parent=51 // pred_region
          %s328 = sand.u32 %s46, 1
          %s329 = scalar_lea.sflag [#allocation11], %s328
          %s330 = sand.u32 %s46, 1
          %s331 = smul.addr %s330, 4
          %s332 = scalar_lea.vmem [#allocation10], %s331
          %s334 = ssub.s32 64, 64
          %335 = vsyncadd %s329, %s334
          %s336 = sadd.s32 %s30, %s29
          %s337 = smul.addr %s336, 64
          %s338 = scalar_lea.hbm %s0, %s337
          %s340 = sshll.u32 %s332, 4
          %s341 = int_to_ptr.vmem [resolvable:$true] %s340
          %343 = dma.hbm_to_vmem [thread:$0]  %s338, 64, %s341, %s329
        $region56: #{tpu_custom_call.1} parent=51 // pred_fallthru
          _
      $region52: #{tpu_custom_call.1} parent=5 // pred_fallthru
        _
      %p344 = scmp.le.s32.totalorder 1, %s22
      %p345 = scmp.lt.s32.totalorder %s22, 3
      %p346 = pnand %p344, %p345
      %p347 = pneg %p346
      // Predicated region
      $region57: #{tpu_custom_call.1} parent=5 // pred_check
        _
      $region58: #{tpu_custom_call.1} parent=5 // pred_check_branch
        %349 = sbr.rel (%p346) target = $region60
      $region59: #{tpu_custom_call.1} parent=5 // pred_region
        %s350 = ssub.s32 %s22, 1
        %s351 = sand.u32 %s49, 1
        %s352 = scalar_lea.sflag [#allocation11], %s351
        %s353 = sand.u32 %s49, 1
        %s354 = smul.addr %s353, 4
        %s355 = scalar_lea.vmem [#allocation10], %s354
        // Predicated region
        $region61: #{tpu_custom_call.1} parent=59 // pred_check
          %p356 = pneg %p62
        $region62: #{tpu_custom_call.1} parent=59 // pred_check_branch
          %358 = sbr.rel (%p356) target = $region64
        $region63: #{tpu_custom_call.1} parent=59 // pred_region
          %359 = dma.done %s352, 64
        $region64: #{tpu_custom_call.1} parent=59 // pred_fallthru
          _
        %s360 = sand.u32 %s49, 1
        %s361 = scalar_lea.sflag [#allocation11], %s360
        %s362 = sand.u32 %s49, 1
        %s363 = smul.addr %s362, 4
        %s364 = scalar_lea.vmem [#allocation10], %s363
        %p365 = pneg %p62
        %p366 = pneg %p59
        %p367 = pneg %p83
        %p368 = pneg %p80
        %p369 = pneg %p104
        %p370 = pneg %p101
        %p371 = pneg %p125
        %p372 = pneg %p122
        %p373 = pneg %p146
        %p374 = pneg %p143
        %p375 = pneg %p167
        %p376 = pneg %p164
        %p377 = pneg %p188
        %p378 = pneg %p185
        %p379 = pneg %p209
        %p380 = pneg %p206
        %p381 = pneg %p230
        %p382 = pneg %p227
        %p383 = pneg %p251
        %p384 = pneg %p248
        %p385 = pneg %p279
        %p386 = pneg %p276
        %s387 = sand.u32 %s266, 1
        %s388 = scalar_lea.sflag [#allocation12], %s387
        %s389 = sand.u32 %s266, 1
        %s390 = smul.addr %s389, 8
        %s391 = scalar_lea.vmem [#allocation13], %s390
        %v393 = vld [vmem:[%s355] sm:$0xf]
        %v394 = vunpack.c.l.bf16 %v393
        %v395 = vmul.f32 %v394, %v394
        %vm396 = vcmask 261120
        %v397 = vsel %vm396, %v395, 0.0
        %398 = vadd.xlane.f32.xlu0 %v397
        %v399 = vpop.xlane.xlu0 %398
        %v400 = vrcp.pop 32.0
        %v401 = vmul.f32 %v399, %v400
        %v402 = vadd.f32 %v401, 1e-06
        %v403 = vrsqrt.pop %v402
        %v404 = vmul.f32 %v394, %v403
        %v405 = vpack.c.bf16 %v404, %v404
        %v406 = vld [vmem:[%s1] sm:$0xf]
        %v407 = vld [vmem:[%s1 + $0x4] sm:$0xf]
        %v408 = vld [vmem:[%s1 + $0x8] sm:$0xf]
        %v409 = vld [vmem:[%s1 + $0xc] sm:$0xf]
        %v414 = vunpack.c.l.b16 %v406
        %v415 = vunpack.c.l.b16 %v407
        %v416 = vunpack.c.l.b16 %v408
        %v417 = vunpack.c.l.b16 %v409
        %v418 = vpack.c.b16 %v415, %v414
        %v419 = vpack.c.b16 %v417, %v416
        %v423 = vsel %vm396, %v405, 0
        %425 = vmatprep.subr.bf16.mxu0 0
        %426 = vmatpush1.bf16.msra.mxu0 %v418
        %427 = vmatprep.subr.bf16.mxu0 0
        %428 = vmatpush1.bf16.msra.mxu0 %v419
        %429 = vmatprep.subr.bf16.mxu0 0
        %430 = vmatpush1.bf16.msra.mxu0 0
        %431 = vmatprep.subr.bf16.mxu0 0
        %432 = vmatpush1.bf16.msra.mxu0 0
        %433 = vmatprep.subr.bf16.mxu0 0
        %434 = vmatpush1.bf16.msra.mxu0 0
        %435 = vmatprep.subr.bf16.mxu0 0
        %436 = vmatpush1.bf16.msra.mxu0 0
        %437 = vmatprep.subr.bf16.mxu0 0
        %438 = vmatpush1.bf16.msra.mxu0 0
        %439 = vmatprep.subr.bf16.mxu0 0
        %440 = vmatpush1.bf16.msra.mxu0 0
        %441 = vmatprep.subr.bf16.mxu0 0
        %442 = vmatpush1.bf16.msra.mxu0 0
        %443 = vmatprep.subr.bf16.mxu0 0
        %444 = vmatpush1.bf16.msra.mxu0 0
        %445 = vmatprep.subr.bf16.mxu0 0
        %446 = vmatpush1.bf16.msra.mxu0 0
        %447 = vmatprep.subr.bf16.mxu0 0
        %448 = vmatpush1.bf16.msra.mxu0 0
        %449 = vmatprep.subr.bf16.mxu0 0
        %450 = vmatpush1.bf16.msra.mxu0 0
        %451 = vmatprep.subr.bf16.mxu0 0
        %452 = vmatpush1.bf16.msra.mxu0 0
        %453 = vmatprep.subr.bf16.mxu0 0
        %454 = vmatpush1.bf16.msra.mxu0 0
        %455 = vmatprep.subr.bf16.mxu0 0
        %456 = vmatpush1.bf16.msra.mxu0 0
        %457 = vmatprep.mubr.bf16.mxu0 0
        %458 = vmatmul.mubr.bf16.gmra.mrb[0].mxu0 %v423
        %v459 = vpop.f32.mrb[0].mxu0
        %v460 = vadd.f32 0.0, %v459
        %v461 = vpop.f32.mrb[0].mxu0
        %v462 = vpop.f32.mrb[0].mxu0
        %v463 = vpop.f32.mrb[0].mxu0
        %464 = vdwg.mxu0
        %v465 = vpack.c.bf16 %v460, %v460
        %vm466 = vcmask 257024
        %467 = vst.msk [vmem:[#allocation2] sm:$0xf] %vm466, %v465
        %s468 = smul.u32 %s32, 8
        %v469 = vld [vmem:[%s2] sm:$0xf]
        %v470 = vld [vmem:[%s2 + $0x4] sm:$0xf]
        %v471 = vld [vmem:[%s2 + $0x8] sm:$0xf]
        %v472 = vld [vmem:[%s2 + $0xc] sm:$0xf]
        %v477 = vunpack.c.l.b16 %v469
        %v478 = vunpack.c.l.b16 %v470
        %v479 = vunpack.c.l.b16 %v471
        %v480 = vunpack.c.l.b16 %v472
        %v481 = vpack.c.b16 %v478, %v477
        %v482 = vpack.c.b16 %v480, %v479
        %485 = vmatprep.subr.bf16.mxu0 0
        %486 = vmatpush1.bf16.msra.mxu0 %v481
        %487 = vmatprep.subr.bf16.mxu0 0
        %488 = vmatpush1.bf16.msra.mxu0 %v482
        %489 = vmatprep.subr.bf16.mxu0 0
        %490 = vmatpush1.bf16.msra.mxu0 0
        %491 = vmatprep.subr.bf16.mxu0 0
        %492 = vmatpush1.bf16.msra.mxu0 0
        %493 = vmatprep.subr.bf16.mxu0 0
        %494 = vmatpush1.bf16.msra.mxu0 0
        %495 = vmatprep.subr.bf16.mxu0 0
        %496 = vmatpush1.bf16.msra.mxu0 0
        %497 = vmatprep.subr.bf16.mxu0 0
        %498 = vmatpush1.bf16.msra.mxu0 0
        %499 = vmatprep.subr.bf16.mxu0 0
        %500 = vmatpush1.bf16.msra.mxu0 0
        %501 = vmatprep.subr.bf16.mxu0 0
        %502 = vmatpush1.bf16.msra.mxu0 0
        %503 = vmatprep.subr.bf16.mxu0 0
        %504 = vmatpush1.bf16.msra.mxu0 0
        %505 = vmatprep.subr.bf16.mxu0 0
        %506 = vmatpush1.bf16.msra.mxu0 0
        %507 = vmatprep.subr.bf16.mxu0 0
        %508 = vmatpush1.bf16.msra.mxu0 0
        %509 = vmatprep.subr.bf16.mxu0 0
        %510 = vmatpush1.bf16.msra.mxu0 0
        %511 = vmatprep.subr.bf16.mxu0 0
        %512 = vmatpush1.bf16.msra.mxu0 0
        %513 = vmatprep.subr.bf16.mxu0 0
        %514 = vmatpush1.bf16.msra.mxu0 0
        %515 = vmatprep.subr.bf16.mxu0 0
        %516 = vmatpush1.bf16.msra.mxu0 0
        %517 = vmatprep.mubr.bf16.mxu0 0
        %518 = vmatmul.mubr.bf16.gmra.mrb[0].mxu0 %v423
        %v519 = vpop.f32.mrb[0].mxu0
        %v520 = vadd.f32 0.0, %v519
        %v521 = vpop.f32.mrb[0].mxu0
        %v522 = vpop.f32.mrb[0].mxu0
        %v523 = vpop.f32.mrb[0].mxu0
        %524 = vdwg.mxu0
        %v525 = vpack.c.bf16 %v520, %v520
        %s526 = sshra.s32 %s468, 3
        %s527 = sand.u32 %s468, 7
        %s528 = smul.addr %s526, 4
        %s529 = scalar_lea.vmem [#allocation3], %s528
        %530 = vst.msk [vmem:[%s529] sm:$0xf] %vm466, %v525
        %v531 = vld [vmem:[%s3] sm:$0xf]
        %v532 = vld [vmem:[%s3 + $0x4] sm:$0xf]
        %v533 = vld [vmem:[%s3 + $0x8] sm:$0xf]
        %v534 = vld [vmem:[%s3 + $0xc] sm:$0xf]
        %v539 = vunpack.c.l.b16 %v531
        %v540 = vunpack.c.l.b16 %v532
        %v541 = vunpack.c.l.b16 %v533
        %v542 = vunpack.c.l.b16 %v534
        %v543 = vpack.c.b16 %v540, %v539
        %v544 = vpack.c.b16 %v542, %v541
        %547 = vmatprep.subr.bf16.mxu0 0
        %548 = vmatpush1.bf16.msra.mxu0 %v543
        %549 = vmatprep.subr.bf16.mxu0 0
        %550 = vmatpush1.bf16.msra.mxu0 %v544
        %551 = vmatprep.subr.bf16.mxu0 0
        %552 = vmatpush1.bf16.msra.mxu0 0
        %553 = vmatprep.subr.bf16.mxu0 0
        %554 = vmatpush1.bf16.msra.mxu0 0
        %555 = vmatprep.subr.bf16.mxu0 0
        %556 = vmatpush1.bf16.msra.mxu0 0
        %557 = vmatprep.subr.bf16.mxu0 0
        %558 = vmatpush1.bf16.msra.mxu0 0
        %559 = vmatprep.subr.bf16.mxu0 0
        %560 = vmatpush1.bf16.msra.mxu0 0
        %561 = vmatprep.subr.bf16.mxu0 0
        %562 = vmatpush1.bf16.msra.mxu0 0
        %563 = vmatprep.subr.bf16.mxu0 0
        %564 = vmatpush1.bf16.msra.mxu0 0
        %565 = vmatprep.subr.bf16.mxu0 0
        %566 = vmatpush1.bf16.msra.mxu0 0
        %567 = vmatprep.subr.bf16.mxu0 0
        %568 = vmatpush1.bf16.msra.mxu0 0
        %569 = vmatprep.subr.bf16.mxu0 0
        %570 = vmatpush1.bf16.msra.mxu0 0
        %571 = vmatprep.subr.bf16.mxu0 0
        %572 = vmatpush1.bf16.msra.mxu0 0
        %573 = vmatprep.subr.bf16.mxu0 0
        %574 = vmatpush1.bf16.msra.mxu0 0
        %575 = vmatprep.subr.bf16.mxu0 0
        %576 = vmatpush1.bf16.msra.mxu0 0
        %577 = vmatprep.subr.bf16.mxu0 0
        %578 = vmatpush1.bf16.msra.mxu0 0
        %579 = vmatprep.mubr.bf16.mxu0 0
        %580 = vmatmul.mubr.bf16.gmra.mrb[0].mxu0 %v423
        %v581 = vpop.f32.mrb[0].mxu0
        %v582 = vadd.f32 0.0, %v581
        %v583 = vpop.f32.mrb[0].mxu0
        %v584 = vpop.f32.mrb[0].mxu0
        %v585 = vpop.f32.mrb[0].mxu0
        %586 = vdwg.mxu0
        %v587 = vpack.c.bf16 %v582, %v582
        %s588 = smul.addr %s526, 4
        %s589 = scalar_lea.vmem [#allocation4], %s588
        %590 = vst.msk [vmem:[%s589] sm:$0xf] %vm466, %v587
        %v591 = vlaneseq
        %v592 = vshrl.u32 %v591, 7
        %v593 = vlaneseq
        %v594 = vand.u32 %v593, 127
        %vm595 = vcmp.le.s32.totalorder %v594, %v592
        %v596 = vsel %vm595, 0.0, -1e+30
        %s597 = sadd.s32 %s32, 1
        %v598 = vld [vmem:[#allocation2] sm:$0xf]
        %vm599 = vcmask 7168
        %600 = vst.msk [vmem:[#allocation7] sm:$0xff] %vm599, -1e+30
        %601 = vst.msk [vmem:[#allocation8] sm:$0xff] %vm599, 0.0
        %vm602 = vcmask 64512
        %603 = vst.msk [vmem:[#allocation9] sm:$0xff] %vm602, 0.0
        // While loop
        $region65: #{tpu_custom_call.1} parent=59 // loop_pre_header
          _
        $region66: #{tpu_custom_call.1} parent=59 // loop_header
          %s605 = sphi 0, %s607
          %p606 = scmp.ge.s32.totalorder %s605, %s597
        $region67: #{tpu_custom_call.1} parent=59 // loop_header_branch
          %609 = sbr.rel (%p606) target = $region71
        $region68: #{tpu_custom_call.1} parent=59 // loop_body
          %s610 = smul.u32 %s605, 8
          %s611 = sshra.s32 %s610, 3
          %s612 = sand.u32 %s610, 7
          %s613 = smul.addr %s611, 4
          %s614 = scalar_lea.vmem [#allocation3], %s613
          %v615 = vld [vmem:[%s614] sm:$0xf]
          %s616 = smul.addr %s611, 4
          %s617 = scalar_lea.vmem [#allocation4], %s616
          %v618 = vld [vmem:[%s617] sm:$0xf]
          %v620 = vsel %vm602, %v598, 0
          %v623 = vsel %vm602, %v615, 0
          %625 = vmatprep.subr.bf16.mxu0 0
          %626 = vmatpush1.bf16.xpose.msra.mxu0 %v623
          %627 = vmatprep.subr.bf16.mxu0 0
          %628 = vmatpush1.bf16.xpose.msra.mxu0 0
          %629 = vmatprep.subr.bf16.mxu0 0
          %630 = vmatpush1.bf16.xpose.msra.mxu0 0
          %631 = vmatprep.subr.bf16.mxu0 0
          %632 = vmatpush1.bf16.xpose.msra.mxu0 0
          %633 = vmatprep.subr.bf16.mxu0 0
          %634 = vmatpush1.bf16.xpose.msra.mxu0 0
          %635 = vmatprep.subr.bf16.mxu0 0
          %636 = vmatpush1.bf16.xpose.msra.mxu0 0
          %637 = vmatprep.subr.bf16.mxu0 0
          %638 = vmatpush1.bf16.xpose.msra.mxu0 0
          %639 = vmatprep.subr.bf16.mxu0 0
          %640 = vmatpush1.bf16.xpose.msra.mxu0 0
          %641 = vmatprep.subr.bf16.mxu0 0
          %642 = vmatpush1.bf16.xpose.msra.mxu0 0
          %643 = vmatprep.subr.bf16.mxu0 0
          %644 = vmatpush1.bf16.xpose.msra.mxu0 0
          %645 = vmatprep.subr.bf16.mxu0 0
          %646 = vmatpush1.bf16.xpose.msra.mxu0 0
          %647 = vmatprep.subr.bf16.mxu0 0
          %648 = vmatpush1.bf16.xpose.msra.mxu0 0
          %649 = vmatprep.subr.bf16.mxu0 0
          %650 = vmatpush1.bf16.xpose.msra.mxu0 0
          %651 = vmatprep.subr.bf16.mxu0 0
          %652 = vmatpush1.bf16.xpose.msra.mxu0 0
          %653 = vmatprep.subr.bf16.mxu0 0
          %654 = vmatpush1.bf16.xpose.msra.mxu0 0
          %655 = vmatprep.subr.bf16.mxu0 0
          %656 = vmatpush1.bf16.xpose.msra.mxu0 0
          %657 = vmatprep.mubr.bf16.mxu0 0
          %658 = vmatmul.mubr.bf16.gmra.mrb[0].mxu0 %v620
          %v659 = vpop.f32.mrb[0].mxu0
          %v660 = vadd.f32 0.0, %v659
          %v661 = vpop.f32.mrb[0].mxu0
          %v662 = vpop.f32.mrb[0].mxu0
          %v663 = vpop.f32.mrb[0].mxu0
          %664 = vdwg.mxu0
          %v665 = vmul.f32 %v660, 0.35355338
          %p666 = scmp.eq.s32.totalorder %s605, %s32
          %s667 = scalar_select %p666, 1, 0
          %s668 = scvt.s32.f32 %s667
          %v669 = vstv %s668
          %v670 = vmul.f32 %v596, %v669
          %v671 = vadd.f32 %v665, %v670
          %v672 = vld [vmem:[#allocation7] sm:$0xff]
          %v673 = vsel %vm602, %v671, -inf
          %674 = vmax.xlane.f32.xlu0 %v673
          %v675 = vpop.xlane.xlu0 %674
          %v676 = vmax.f32 %v672, %v675
          %v677 = vsub.f32 %v672, %v676
          %v678 = vmul.f32 %v677, 1.442695
          %v679 = vpow.pop %v678
          %681 = vset.pattern.permute.xlu0 0
          %682 = vperm.xlu0 %681, %v676
          %v683 = vpop.permute.xlu0 %682
          %v685 = vsub.f32 %v671, %v683
          %v686 = vmul.f32 %v685, 1.442695
          %v687 = vpow.pop %v686
          %v688 = vld [vmem:[#allocation8] sm:$0xff]
          %v689 = vmul.f32 %v679, %v688
          %v690 = vsel %vm602, %v687, 0.0
          %691 = vadd.xlane.f32.xlu0 %v690
          %v692 = vpop.xlane.xlu0 %691
          %v693 = vadd.f32 %v689, %v692
          %694 = vst.msk [vmem:[#allocation8] sm:$0xff] %vm599, %v693
          %v695 = vld [vmem:[#allocation9] sm:$0xff]
          %697 = vset.pattern.permute.xlu0 0
          %698 = vperm.xlu0 %697, %v679
          %v699 = vpop.permute.xlu0 %698
          %v701 = vmul.f32 %v699, %v695
          %v702 = vpack.c.bf16 %v687, %v687
          %v704 = vsel %vm602, %v702, 0
          %vm706 = vcmask 1043456
          %v708 = vsel %vm706, %v618, 0
          %710 = vmatprep.subr.bf16.mxu0 0
          %711 = vmatpush1.bf16.msra.mxu0 %v708
          %712 = vmatprep.subr.bf16.mxu0 0
          %713 = vmatpush1.bf16.msra.mxu0 0
          %714 = vmatprep.subr.bf16.mxu0 0
          %715 = vmatpush1.bf16.msra.mxu0 0
          %716 = vmatprep.subr.bf16.mxu0 0
          %717 = vmatpush1.bf16.msra.mxu0 0
          %718 = vmatprep.subr.bf16.mxu0 0
          %719 = vmatpush1.bf16.msra.mxu0 0
          %720 = vmatprep.subr.bf16.mxu0 0
          %721 = vmatpush1.bf16.msra.mxu0 0
          %722 = vmatprep.subr.bf16.mxu0 0
          %723 = vmatpush1.bf16.msra.mxu0 0
          %724 = vmatprep.subr.bf16.mxu0 0
          %725 = vmatpush1.bf16.msra.mxu0 0
          %726 = vmatprep.subr.bf16.mxu0 0
          %727 = vmatpush1.bf16.msra.mxu0 0
          %728 = vmatprep.subr.bf16.mxu0 0
          %729 = vmatpush1.bf16.msra.mxu0 0
          %730 = vmatprep.subr.bf16.mxu0 0
          %731 = vmatpush1.bf16.msra.mxu0 0
          %732 = vmatprep.subr.bf16.mxu0 0
          %733 = vmatpush1.bf16.msra.mxu0 0
          %734 = vmatprep.subr.bf16.mxu0 0
          %735 = vmatpush1.bf16.msra.mxu0 0
          %736 = vmatprep.subr.bf16.mxu0 0
          %737 = vmatpush1.bf16.msra.mxu0 0
          %738 = vmatprep.subr.bf16.mxu0 0
          %739 = vmatpush1.bf16.msra.mxu0 0
          %740 = vmatprep.subr.bf16.mxu0 0
          %741 = vmatpush1.bf16.msra.mxu0 0
          %742 = vmatprep.mubr.bf16.mxu0 0
          %743 = vmatmul.mubr.bf16.gmra.mrb[0].mxu0 %v704
          %v744 = vpop.f32.mrb[0].mxu0
          %v745 = vadd.f32 0.0, %v744
          %v746 = vpop.f32.mrb[0].mxu0
          %v747 = vpop.f32.mrb[0].mxu0
          %v748 = vpop.f32.mrb[0].mxu0
          %749 = vdwg.mxu0
          %v750 = vadd.f32 %v701, %v745
          %751 = vst.msk [vmem:[#allocation9] sm:$0xff] %vm602, %v750
          %752 = vst.msk [vmem:[#allocation7] sm:$0xff] %vm599, %v676
        $region69: #{tpu_custom_call.1} parent=59 // loop_footer
          %s607 = sadd.s32 %s605, 1
        $region70: #{tpu_custom_call.1} parent=59 // loop_footer_branch
          %604 = sbr.rel target = $region66
        $region71: #{tpu_custom_call.1} parent=59 // loop_exit
          _
        %v753 = vld [vmem:[#allocation8] sm:$0xff]
        %v754 = vrcp.pop %v753
        %v755 = vld [vmem:[#allocation9] sm:$0xff]
        %757 = vset.pattern.permute.xlu0 0
        %758 = vperm.xlu0 %757, %v754
        %v759 = vpop.permute.xlu0 %758
        %v761 = vmul.f32 %v755, %v759
        %762 = vst.msk [vmem:[#allocation5] sm:$0xff] %vm602, %v761
        %v763 = vld [vmem:[#allocation2] sm:$0xf]
        %764 = vst.msk [vmem:[#allocation7] sm:$0xff] %vm599, -1e+30
        %765 = vst.msk [vmem:[#allocation8] sm:$0xff] %vm599, 0.0
        %766 = vst.msk [vmem:[#allocation9] sm:$0xff] %vm602, 0.0
        // While loop
        $region72: #{tpu_custom_call.1} parent=59 // loop_pre_header
          _
        $region73: #{tpu_custom_call.1} parent=59 // loop_header
          %s768 = sphi 0, %s770
          %p769 = scmp.ge.s32.totalorder %s768, %s597
        $region74: #{tpu_custom_call.1} parent=59 // loop_header_branch
          %772 = sbr.rel (%p769) target = $region78
        $region75: #{tpu_custom_call.1} parent=59 // loop_body
          %s773 = smul.u32 %s768, 8
          %s774 = sshra.s32 %s773, 3
          %s775 = sand.u32 %s773, 7
          %s776 = smul.addr %s774, 4
          %s777 = scalar_lea.vmem [#allocation3], %s776
          %v778 = vld [vmem:[%s777] sm:$0xf]
          %s779 = smul.addr %s774, 4
          %s780 = scalar_lea.vmem [#allocation4], %s779
          %v781 = vld [vmem:[%s780] sm:$0xf]
          %v783 = vunpack.c.l.b16 %v763
          %v784 = vpack.c.b16 %v783, %v783
          %785 = vrot.lane.b32.xlu0 %v784, 120
          %v786 = vpop.permute.xlu0 %785
          %v788 = vunpack.c.l.b16 %v778
          %v789 = vpack.c.b16 %v788, %v788
          %790 = vrot.lane.b32.xlu0 %v789, 120
          %v791 = vpop.permute.xlu0 %790
          %v793 = vsel %vm602, %v786, 0
          %v796 = vsel %vm602, %v791, 0
          %798 = vmatprep.subr.bf16.mxu0 0
          %799 = vmatpush1.bf16.xpose.msra.mxu0 %v796
          %800 = vmatprep.subr.bf16.mxu0 0
          %801 = vmatpush1.bf16.xpose.msra.mxu0 0
          %802 = vmatprep.subr.bf16.mxu0 0
          %803 = vmatpush1.bf16.xpose.msra.mxu0 0
          %804 = vmatprep.subr.bf16.mxu0 0
          %805 = vmatpush1.bf16.xpose.msra.mxu0 0
          %806 = vmatprep.subr.bf16.mxu0 0
          %807 = vmatpush1.bf16.xpose.msra.mxu0 0
          %808 = vmatprep.subr.bf16.mxu0 0
          %809 = vmatpush1.bf16.xpose.msra.mxu0 0
          %810 = vmatprep.subr.bf16.mxu0 0
          %811 = vmatpush1.bf16.xpose.msra.mxu0 0
          %812 = vmatprep.subr.bf16.mxu0 0
          %813 = vmatpush1.bf16.xpose.msra.mxu0 0
          %814 = vmatprep.subr.bf16.mxu0 0
          %815 = vmatpush1.bf16.xpose.msra.mxu0 0
          %816 = vmatprep.subr.bf16.mxu0 0
          %817 = vmatpush1.bf16.xpose.msra.mxu0 0
          %818 = vmatprep.subr.bf16.mxu0 0
          %819 = vmatpush1.bf16.xpose.msra.mxu0 0
          %820 = vmatprep.subr.bf16.mxu0 0
          %821 = vmatpush1.bf16.xpose.msra.mxu0 0
          %822 = vmatprep.subr.bf16.mxu0 0
          %823 = vmatpush1.bf16.xpose.msra.mxu0 0
          %824 = vmatprep.subr.bf16.mxu0 0
          %825 = vmatpush1.bf16.xpose.msra.mxu0 0
          %826 = vmatprep.subr.bf16.mxu0 0
          %827 = vmatpush1.bf16.xpose.msra.mxu0 0
          %828 = vmatprep.subr.bf16.mxu0 0
          %829 = vmatpush1.bf16.xpose.msra.mxu0 0
          %830 = vmatprep.mubr.bf16.mxu0 0
          %831 = vmatmul.mubr.bf16.gmra.mrb[0].mxu0 %v793
          %v832 = vpop.f32.mrb[0].mxu0
          %v833 = vadd.f32 0.0, %v832
          %v834 = vpop.f32.mrb[0].mxu0
          %v835 = vpop.f32.mrb[0].mxu0
          %v836 = vpop.f32.mrb[0].mxu0
          %837 = vdwg.mxu0
          %v838 = vmul.f32 %v833, 0.35355338
          %p839 = scmp.eq.s32.totalorder %s768, %s32
          %s840 = scalar_select %p839, 1, 0
          %s841 = scvt.s32.f32 %s840
          %v842 = vstv %s841
          %v843 = vmul.f32 %v596, %v842
          %v844 = vadd.f32 %v838, %v843
          %v845 = vld [vmem:[#allocation7] sm:$0xff]
          %v846 = vsel %vm602, %v844, -inf
          %847 = vmax.xlane.f32.xlu0 %v846
          %v848 = vpop.xlane.xlu0 %847
          %v849 = vmax.f32 %v845, %v848
          %v850 = vsub.f32 %v845, %v849
          %v851 = vmul.f32 %v850, 1.442695
          %v852 = vpow.pop %v851
          %854 = vset.pattern.permute.xlu0 0
          %855 = vperm.xlu0 %854, %v849
          %v856 = vpop.permute.xlu0 %855
          %v858 = vsub.f32 %v844, %v856
          %v859 = vmul.f32 %v858, 1.442695
          %v860 = vpow.pop %v859
          %v861 = vld [vmem:[#allocation8] sm:$0xff]
          %v862 = vmul.f32 %v852, %v861
          %v863 = vsel %vm602, %v860, 0.0
          %864 = vadd.xlane.f32.xlu0 %v863
          %v865 = vpop.xlane.xlu0 %864
          %v866 = vadd.f32 %v862, %v865
          %867 = vst.msk [vmem:[#allocation8] sm:$0xff] %vm599, %v866
          %v868 = vld [vmem:[#allocation9] sm:$0xff]
          %870 = vset.pattern.permute.xlu0 0
          %871 = vperm.xlu0 %870, %v852
          %v872 = vpop.permute.xlu0 %871
          %v874 = vmul.f32 %v872, %v868
          %v875 = vpack.c.bf16 %v860, %v860
          %v877 = vunpack.c.l.b16 %v781
          %v878 = vpack.c.b16 %v877, %v877
          %879 = vrot.lane.b32.xlu0 %v878, 120
          %v880 = vpop.permute.xlu0 %879
          %v882 = vsel %vm602, %v875, 0
          %vm884 = vcmask 1043456
          %v886 = vsel %vm884, %v880, 0
          %888 = vmatprep.subr.bf16.mxu0 0
          %889 = vmatpush1.bf16.msra.mxu0 %v886
          %890 = vmatprep.subr.bf16.mxu0 0
          %891 = vmatpush1.bf16.msra.mxu0 0
          %892 = vmatprep.subr.bf16.mxu0 0
          %893 = vmatpush1.bf16.msra.mxu0 0
          %894 = vmatprep.subr.bf16.mxu0 0
          %895 = vmatpush1.bf16.msra.mxu0 0
          %896 = vmatprep.subr.bf16.mxu0 0
          %897 = vmatpush1.bf16.msra.mxu0 0
          %898 = vmatprep.subr.bf16.mxu0 0
          %899 = vmatpush1.bf16.msra.mxu0 0
          %900 = vmatprep.subr.bf16.mxu0 0
          %901 = vmatpush1.bf16.msra.mxu0 0
          %902 = vmatprep.subr.bf16.mxu0 0
          %903 = vmatpush1.bf16.msra.mxu0 0
          %904 = vmatprep.subr.bf16.mxu0 0
          %905 = vmatpush1.bf16.msra.mxu0 0
          %906 = vmatprep.subr.bf16.mxu0 0
          %907 = vmatpush1.bf16.msra.mxu0 0
          %908 = vmatprep.subr.bf16.mxu0 0
          %909 = vmatpush1.bf16.msra.mxu0 0
          %910 = vmatprep.subr.bf16.mxu0 0
          %911 = vmatpush1.bf16.msra.mxu0 0
          %912 = vmatprep.subr.bf16.mxu0 0
          %913 = vmatpush1.bf16.msra.mxu0 0
          %914 = vmatprep.subr.bf16.mxu0 0
          %915 = vmatpush1.bf16.msra.mxu0 0
          %916 = vmatprep.subr.bf16.mxu0 0
          %917 = vmatpush1.bf16.msra.mxu0 0
          %918 = vmatprep.subr.bf16.mxu0 0
          %919 = vmatpush1.bf16.msra.mxu0 0
          %920 = vmatprep.mubr.bf16.mxu0 0
          %921 = vmatmul.mubr.bf16.gmra.mrb[0].mxu0 %v882
          %v922 = vpop.f32.mrb[0].mxu0
          %v923 = vadd.f32 0.0, %v922
          %v924 = vpop.f32.mrb[0].mxu0
          %v925 = vpop.f32.mrb[0].mxu0
          %v926 = vpop.f32.mrb[0].mxu0
          %927 = vdwg.mxu0
          %v928 = vadd.f32 %v874, %v923
          %929 = vst.msk [vmem:[#allocation9] sm:$0xff] %vm602, %v928
          %930 = vst.msk [vmem:[#allocation7] sm:$0xff] %vm599, %v849
        $region76: #{tpu_custom_call.1} parent=59 // loop_footer
          %s770 = sadd.s32 %s768, 1
        $region77: #{tpu_custom_call.1} parent=59 // loop_footer_branch
          %767 = sbr.rel target = $region73
        $region78: #{tpu_custom_call.1} parent=59 // loop_exit
          _
        %v931 = vld [vmem:[#allocation8] sm:$0xff]
        %v932 = vrcp.pop %v931
        %v933 = vld [vmem:[#allocation9] sm:$0xff]
        %935 = vset.pattern.permute.xlu0 0
        %936 = vperm.xlu0 %935, %v932
        %v937 = vpop.permute.xlu0 %936
        %v939 = vmul.f32 %v933, %v937
        %941 = vrot.lane.b32.xlu0 %v939, 8
        %v942 = vpop.permute.xlu0 %941
        %vm944 = vcmask 130112
        %945 = vst.msk [vmem:[#allocation5] sm:$0xff] %vm944, %v942
        %v946 = vld [vmem:[#allocation2] sm:$0xf]
        %947 = vst.msk [vmem:[#allocation7] sm:$0xff] %vm599, -1e+30
        %948 = vst.msk [vmem:[#allocation8] sm:$0xff] %vm599, 0.0
        %949 = vst.msk [vmem:[#allocation9] sm:$0xff] %vm602, 0.0
        // While loop
        $region79: #{tpu_custom_call.1} parent=59 // loop_pre_header
          _
        $region80: #{tpu_custom_call.1} parent=59 // loop_header
          %s951 = sphi 0, %s953
          %p952 = scmp.ge.s32.totalorder %s951, %s597
        $region81: #{tpu_custom_call.1} parent=59 // loop_header_branch
          %955 = sbr.rel (%p952) target = $region85
        $region82: #{tpu_custom_call.1} parent=59 // loop_body
          %s956 = smul.u32 %s951, 8
          %s957 = sshra.s32 %s956, 3
          %s958 = sand.u32 %s956, 7
          %s959 = smul.addr %s957, 4
          %s960 = scalar_lea.vmem [#allocation3], %s959
          %v961 = vld [vmem:[%s960] sm:$0xf]
          %s962 = smul.addr %s957, 4
          %s963 = scalar_lea.vmem [#allocation4], %s962
          %v964 = vld [vmem:[%s963] sm:$0xf]
          %v966 = vunpack.c.l.b16 %v946
          %v967 = vpack.c.b16 %v966, %v966
          %968 = vrot.lane.b32.xlu0 %v967, 112
          %v969 = vpop.permute.xlu0 %968
          %v971 = vunpack.c.l.b16 %v961
          %v972 = vpack.c.b16 %v971, %v971
          %973 = vrot.lane.b32.xlu0 %v972, 112
          %v974 = vpop.permute.xlu0 %973
          %v976 = vsel %vm602, %v969, 0
          %v979 = vsel %vm602, %v974, 0
          %981 = vmatprep.subr.bf16.mxu0 0
          %982 = vmatpush1.bf16.xpose.msra.mxu0 %v979
          %983 = vmatprep.subr.bf16.mxu0 0
          %984 = vmatpush1.bf16.xpose.msra.mxu0 0
          %985 = vmatprep.subr.bf16.mxu0 0
          %986 = vmatpush1.bf16.xpose.msra.mxu0 0
          %987 = vmatprep.subr.bf16.mxu0 0
          %988 = vmatpush1.bf16.xpose.msra.mxu0 0
          %989 = vmatprep.subr.bf16.mxu0 0
          %990 = vmatpush1.bf16.xpose.msra.mxu0 0
          %991 = vmatprep.subr.bf16.mxu0 0
          %992 = vmatpush1.bf16.xpose.msra.mxu0 0
          %993 = vmatprep.subr.bf16.mxu0 0
          %994 = vmatpush1.bf16.xpose.msra.mxu0 0
          %995 = vmatprep.subr.bf16.mxu0 0
          %996 = vmatpush1.bf16.xpose.msra.mxu0 0
          %997 = vmatprep.subr.bf16.mxu0 0
          %998 = vmatpush1.bf16.xpose.msra.mxu0 0
          %999 = vmatprep.subr.bf16.mxu0 0
          %1000 = vmatpush1.bf16.xpose.msra.mxu0 0
          %1001 = vmatprep.subr.bf16.mxu0 0
          %1002 = vmatpush1.bf16.xpose.msra.mxu0 0
          %1003 = vmatprep.subr.bf16.mxu0 0
          %1004 = vmatpush1.bf16.xpose.msra.mxu0 0
          %1005 = vmatprep.subr.bf16.mxu0 0
          %1006 = vmatpush1.bf16.xpose.msra.mxu0 0
          %1007 = vmatprep.subr.bf16.mxu0 0
          %1008 = vmatpush1.bf16.xpose.msra.mxu0 0
          %1009 = vmatprep.subr.bf16.mxu0 0
          %1010 = vmatpush1.bf16.xpose.msra.mxu0 0
          %1011 = vmatprep.subr.bf16.mxu0 0
          %1012 = vmatpush1.bf16.xpose.msra.mxu0 0
          %1013 = vmatprep.mubr.bf16.mxu0 0
          %1014 = vmatmul.mubr.bf16.gmra.mrb[0].mxu0 %v976
          %v1015 = vpop.f32.mrb[0].mxu0
          %v1016 = vadd.f32 0.0, %v1015
          %v1017 = vpop.f32.mrb[0].mxu0
          %v1018 = vpop.f32.mrb[0].mxu0
          %v1019 = vpop.f32.mrb[0].mxu0
          %1020 = vdwg.mxu0
          %v1021 = vmul.f32 %v1016, 0.35355338
          %p1022 = scmp.eq.s32.totalorder %s951, %s32
          %s1023 = scalar_select %p1022, 1, 0
          %s1024 = scvt.s32.f32 %s1023
          %v1025 = vstv %s1024
          %v1026 = vmul.f32 %v596, %v1025
          %v1027 = vadd.f32 %v1021, %v1026
          %v1028 = vld [vmem:[#allocation7] sm:$0xff]
          %v1029 = vsel %vm602, %v1027, -inf
          %1030 = vmax.xlane.f32.xlu0 %v1029
          %v1031 = vpop.xlane.xlu0 %1030
          %v1032 = vmax.f32 %v1028, %v1031
          %v1033 = vsub.f32 %v1028, %v1032
          %v1034 = vmul.f32 %v1033, 1.442695
          %v1035 = vpow.pop %v1034
          %1037 = vset.pattern.permute.xlu0 0
          %1038 = vperm.xlu0 %1037, %v1032
          %v1039 = vpop.permute.xlu0 %1038
          %v1041 = vsub.f32 %v1027, %v1039
          %v1042 = vmul.f32 %v1041, 1.442695
          %v1043 = vpow.pop %v1042
          %v1044 = vld [vmem:[#allocation8] sm:$0xff]
          %v1045 = vmul.f32 %v1035, %v1044
          %v1046 = vsel %vm602, %v1043, 0.0
          %1047 = vadd.xlane.f32.xlu0 %v1046
          %v1048 = vpop.xlane.xlu0 %1047
          %v1049 = vadd.f32 %v1045, %v1048
          %1050 = vst.msk [vmem:[#allocation8] sm:$0xff] %vm599, %v1049
          %v1051 = vld [vmem:[#allocation9] sm:$0xff]
          %1053 = vset.pattern.permute.xlu0 0
          %1054 = vperm.xlu0 %1053, %v1035
          %v1055 = vpop.permute.xlu0 %1054
          %v1057 = vmul.f32 %v1055, %v1051
          %v1058 = vpack.c.bf16 %v1043, %v1043
          %v1060 = vunpack.c.l.b16 %v964
          %v1061 = vpack.c.b16 %v1060, %v1060
          %1062 = vrot.lane.b32.xlu0 %v1061, 112
          %v1063 = vpop.permute.xlu0 %1062
          %v1065 = vsel %vm602, %v1058, 0
          %vm1067 = vcmask 1043456
          %v1069 = vsel %vm1067, %v1063, 0
          %1071 = vmatprep.subr.bf16.mxu0 0
          %1072 = vmatpush1.bf16.msra.mxu0 %v1069
          %1073 = vmatprep.subr.bf16.mxu0 0
          %1074 = vmatpush1.bf16.msra.mxu0 0
          %1075 = vmatprep.subr.bf16.mxu0 0
          %1076 = vmatpush1.bf16.msra.mxu0 0
          %1077 = vmatprep.subr.bf16.mxu0 0
          %1078 = vmatpush1.bf16.msra.mxu0 0
          %1079 = vmatprep.subr.bf16.mxu0 0
          %1080 = vmatpush1.bf16.msra.mxu0 0
          %1081 = vmatprep.subr.bf16.mxu0 0
          %1082 = vmatpush1.bf16.msra.mxu0 0
          %1083 = vmatprep.subr.bf16.mxu0 0
          %1084 = vmatpush1.bf16.msra.mxu0 0
          %1085 = vmatprep.subr.bf16.mxu0 0
          %1086 = vmatpush1.bf16.msra.mxu0 0
          %1087 = vmatprep.subr.bf16.mxu0 0
          %1088 = vmatpush1.bf16.msra.mxu0 0
          %1089 = vmatprep.subr.bf16.mxu0 0
          %1090 = vmatpush1.bf16.msra.mxu0 0
          %1091 = vmatprep.subr.bf16.mxu0 0
          %1092 = vmatpush1.bf16.msra.mxu0 0
          %1093 = vmatprep.subr.bf16.mxu0 0
          %1094 = vmatpush1.bf16.msra.mxu0 0
          %1095 = vmatprep.subr.bf16.mxu0 0
          %1096 = vmatpush1.bf16.msra.mxu0 0
          %1097 = vmatprep.subr.bf16.mxu0 0
          %1098 = vmatpush1.bf16.msra.mxu0 0
          %1099 = vmatprep.subr.bf16.mxu0 0
          %1100 = vmatpush1.bf16.msra.mxu0 0
          %1101 = vmatprep.subr.bf16.mxu0 0
          %1102 = vmatpush1.bf16.msra.mxu0 0
          %1103 = vmatprep.mubr.bf16.mxu0 0
          %1104 = vmatmul.mubr.bf16.gmra.mrb[0].mxu0 %v1065
          %v1105 = vpop.f32.mrb[0].mxu0
          %v1106 = vadd.f32 0.0, %v1105
          %v1107 = vpop.f32.mrb[0].mxu0
          %v1108 = vpop.f32.mrb[0].mxu0
          %v1109 = vpop.f32.mrb[0].mxu0
          %1110 = vdwg.mxu0
          %v1111 = vadd.f32 %v1057, %v1106
          %1112 = vst.msk [vmem:[#allocation9] sm:$0xff] %vm602, %v1111
          %1113 = vst.msk [vmem:[#allocation7] sm:$0xff] %vm599, %v1032
        $region83: #{tpu_custom_call.1} parent=59 // loop_footer
          %s953 = sadd.s32 %s951, 1
        $region84: #{tpu_custom_call.1} parent=59 // loop_footer_branch
          %950 = sbr.rel target = $region80
        $region85: #{tpu_custom_call.1} parent=59 // loop_exit
          _
        %v1114 = vld [vmem:[#allocation8] sm:$0xff]
        %v1115 = vrcp.pop %v1114
        %v1116 = vld [vmem:[#allocation9] sm:$0xff]
        %1118 = vset.pattern.permute.xlu0 0
        %1119 = vperm.xlu0 %1118, %v1115
        %v1120 = vpop.permute.xlu0 %1119
        %v1122 = vmul.f32 %v1116, %v1120
        %1124 = vrot.lane.b32.xlu0 %v1122, 16
        %v1125 = vpop.permute.xlu0 %1124
        %vm1127 = vcmask 195712
        %1128 = vst.msk [vmem:[#allocation5] sm:$0xff] %vm1127, %v1125
        %v1129 = vld [vmem:[#allocation2] sm:$0xf]
        %1130 = vst.msk [vmem:[#allocation7] sm:$0xff] %vm599, -1e+30
        %1131 = vst.msk [vmem:[#allocation8] sm:$0xff] %vm599, 0.0
        %1132 = vst.msk [vmem:[#allocation9] sm:$0xff] %vm602, 0.0
        // While loop
        $region86: #{tpu_custom_call.1} parent=59 // loop_pre_header
          _
        $region87: #{tpu_custom_call.1} parent=59 // loop_header
          %s1134 = sphi 0, %s1136
          %p1135 = scmp.ge.s32.totalorder %s1134, %s597
        $region88: #{tpu_custom_call.1} parent=59 // loop_header_branch
          %1138 = sbr.rel (%p1135) target = $region92
        $region89: #{tpu_custom_call.1} parent=59 // loop_body
          %s1139 = smul.u32 %s1134, 8
          %s1140 = sshra.s32 %s1139, 3
          %s1141 = sand.u32 %s1139, 7
          %s1142 = smul.addr %s1140, 4
          %s1143 = scalar_lea.vmem [#allocation3], %s1142
          %v1144 = vld [vmem:[%s1143] sm:$0xf]
          %s1145 = smul.addr %s1140, 4
          %s1146 = scalar_lea.vmem [#allocation4], %s1145
          %v1147 = vld [vmem:[%s1146] sm:$0xf]
          %v1149 = vunpack.c.l.b16 %v1129
          %v1150 = vpack.c.b16 %v1149, %v1149
          %1151 = vrot.lane.b32.xlu0 %v1150, 104
          %v1152 = vpop.permute.xlu0 %1151
          %v1154 = vunpack.c.l.b16 %v1144
          %v1155 = vpack.c.b16 %v1154, %v1154
          %1156 = vrot.lane.b32.xlu0 %v1155, 104
          %v1157 = vpop.permute.xlu0 %1156
          %v1159 = vsel %vm602, %v1152, 0
          %v1162 = vsel %vm602, %v1157, 0
          %1164 = vmatprep.subr.bf16.mxu0 0
          %1165 = vmatpush1.bf16.xpose.msra.mxu0 %v1162
          %1166 = vmatprep.subr.bf16.mxu0 0
          %1167 = vmatpush1.bf16.xpose.msra.mxu0 0
          %1168 = vmatprep.subr.bf16.mxu0 0
          %1169 = vmatpush1.bf16.xpose.msra.mxu0 0
          %1170 = vmatprep.subr.bf16.mxu0 0
          %1171 = vmatpush1.bf16.xpose.msra.mxu0 0
          %1172 = vmatprep.subr.bf16.mxu0 0
          %1173 = vmatpush1.bf16.xpose.msra.mxu0 0
          %1174 = vmatprep.subr.bf16.mxu0 0
          %1175 = vmatpush1.bf16.xpose.msra.mxu0 0
          %1176 = vmatprep.subr.bf16.mxu0 0
          %1177 = vmatpush1.bf16.xpose.msra.mxu0 0
          %1178 = vmatprep.subr.bf16.mxu0 0
          %1179 = vmatpush1.bf16.xpose.msra.mxu0 0
          %1180 = vmatprep.subr.bf16.mxu0 0
          %1181 = vmatpush1.bf16.xpose.msra.mxu0 0
          %1182 = vmatprep.subr.bf16.mxu0 0
          %1183 = vmatpush1.bf16.xpose.msra.mxu0 0
          %1184 = vmatprep.subr.bf16.mxu0 0
          %1185 = vmatpush1.bf16.xpose.msra.mxu0 0
          %1186 = vmatprep.subr.bf16.mxu0 0
          %1187 = vmatpush1.bf16.xpose.msra.mxu0 0
          %1188 = vmatprep.subr.bf16.mxu0 0
          %1189 = vmatpush1.bf16.xpose.msra.mxu0 0
          %1190 = vmatprep.subr.bf16.mxu0 0
          %1191 = vmatpush1.bf16.xpose.msra.mxu0 0
          %1192 = vmatprep.subr.bf16.mxu0 0
          %1193 = vmatpush1.bf16.xpose.msra.mxu0 0
          %1194 = vmatprep.subr.bf16.mxu0 0
          %1195 = vmatpush1.bf16.xpose.msra.mxu0 0
          %1196 = vmatprep.mubr.bf16.mxu0 0
          %1197 = vmatmul.mubr.bf16.gmra.mrb[0].mxu0 %v1159
          %v1198 = vpop.f32.mrb[0].mxu0
          %v1199 = vadd.f32 0.0, %v1198
          %v1200 = vpop.f32.mrb[0].mxu0
          %v1201 = vpop.f32.mrb[0].mxu0
          %v1202 = vpop.f32.mrb[0].mxu0
          %1203 = vdwg.mxu0
          %v1204 = vmul.f32 %v1199, 0.35355338
          %p1205 = scmp.eq.s32.totalorder %s1134, %s32
          %s1206 = scalar_select %p1205, 1, 0
          %s1207 = scvt.s32.f32 %s1206
          %v1208 = vstv %s1207
          %v1209 = vmul.f32 %v596, %v1208
          %v1210 = vadd.f32 %v1204, %v1209
          %v1211 = vld [vmem:[#allocation7] sm:$0xff]
          %v1212 = vsel %vm602, %v1210, -inf
          %1213 = vmax.xlane.f32.xlu0 %v1212
          %v1214 = vpop.xlane.xlu0 %1213
          %v1215 = vmax.f32 %v1211, %v1214
          %v1216 = vsub.f32 %v1211, %v1215
          %v1217 = vmul.f32 %v1216, 1.442695
          %v1218 = vpow.pop %v1217
          %1220 = vset.pattern.permute.xlu0 0
          %1221 = vperm.xlu0 %1220, %v1215
          %v1222 = vpop.permute.xlu0 %1221
          %v1224 = vsub.f32 %v1210, %v1222
          %v1225 = vmul.f32 %v1224, 1.442695
          %v1226 = vpow.pop %v1225
          %v1227 = vld [vmem:[#allocation8] sm:$0xff]
          %v1228 = vmul.f32 %v1218, %v1227
          %v1229 = vsel %vm602, %v1226, 0.0
          %1230 = vadd.xlane.f32.xlu0 %v1229
          %v1231 = vpop.xlane.xlu0 %1230
          %v1232 = vadd.f32 %v1228, %v1231
          %1233 = vst.msk [vmem:[#allocation8] sm:$0xff] %vm599, %v1232
          %v1234 = vld [vmem:[#allocation9] sm:$0xff]
          %1236 = vset.pattern.permute.xlu0 0
          %1237 = vperm.xlu0 %1236, %v1218
          %v1238 = vpop.permute.xlu0 %1237
          %v1240 = vmul.f32 %v1238, %v1234
          %v1241 = vpack.c.bf16 %v1226, %v1226
          %v1243 = vunpack.c.l.b16 %v1147
          %v1244 = vpack.c.b16 %v1243, %v1243
          %1245 = vrot.lane.b32.xlu0 %v1244, 104
          %v1246 = vpop.permute.xlu0 %1245
          %v1248 = vsel %vm602, %v1241, 0
          %vm1250 = vcmask 1043456
          %v1252 = vsel %vm1250, %v1246, 0
          %1254 = vmatprep.subr.bf16.mxu0 0
          %1255 = vmatpush1.bf16.msra.mxu0 %v1252
          %1256 = vmatprep.subr.bf16.mxu0 0
          %1257 = vmatpush1.bf16.msra.mxu0 0
          %1258 = vmatprep.subr.bf16.mxu0 0
          %1259 = vmatpush1.bf16.msra.mxu0 0
          %1260 = vmatprep.subr.bf16.mxu0 0
          %1261 = vmatpush1.bf16.msra.mxu0 0
          %1262 = vmatprep.subr.bf16.mxu0 0
          %1263 = vmatpush1.bf16.msra.mxu0 0
          %1264 = vmatprep.subr.bf16.mxu0 0
          %1265 = vmatpush1.bf16.msra.mxu0 0
          %1266 = vmatprep.subr.bf16.mxu0 0
          %1267 = vmatpush1.bf16.msra.mxu0 0
          %1268 = vmatprep.subr.bf16.mxu0 0
          %1269 = vmatpush1.bf16.msra.mxu0 0
          %1270 = vmatprep.subr.bf16.mxu0 0
          %1271 = vmatpush1.bf16.msra.mxu0 0
          %1272 = vmatprep.subr.bf16.mxu0 0
          %1273 = vmatpush1.bf16.msra.mxu0 0
          %1274 = vmatprep.subr.bf16.mxu0 0
          %1275 = vmatpush1.bf16.msra.mxu0 0
          %1276 = vmatprep.subr.bf16.mxu0 0
          %1277 = vmatpush1.bf16.msra.mxu0 0
          %1278 = vmatprep.subr.bf16.mxu0 0
          %1279 = vmatpush1.bf16.msra.mxu0 0
          %1280 = vmatprep.subr.bf16.mxu0 0
          %1281 = vmatpush1.bf16.msra.mxu0 0
          %1282 = vmatprep.subr.bf16.mxu0 0
          %1283 = vmatpush1.bf16.msra.mxu0 0
          %1284 = vmatprep.subr.bf16.mxu0 0
          %1285 = vmatpush1.bf16.msra.mxu0 0
          %1286 = vmatprep.mubr.bf16.mxu0 0
          %1287 = vmatmul.mubr.bf16.gmra.mrb[0].mxu0 %v1248
          %v1288 = vpop.f32.mrb[0].mxu0
          %v1289 = vadd.f32 0.0, %v1288
          %v1290 = vpop.f32.mrb[0].mxu0
          %v1291 = vpop.f32.mrb[0].mxu0
          %v1292 = vpop.f32.mrb[0].mxu0
          %1293 = vdwg.mxu0
          %v1294 = vadd.f32 %v1240, %v1289
          %1295 = vst.msk [vmem:[#allocation9] sm:$0xff] %vm602, %v1294
          %1296 = vst.msk [vmem:[#allocation7] sm:$0xff] %vm599, %v1215
        $region90: #{tpu_custom_call.1} parent=59 // loop_footer
          %s1136 = sadd.s32 %s1134, 1
        $region91: #{tpu_custom_call.1} parent=59 // loop_footer_branch
          %1133 = sbr.rel target = $region87
        $region92: #{tpu_custom_call.1} parent=59 // loop_exit
          _
        %v1297 = vld [vmem:[#allocation8] sm:$0xff]
        %v1298 = vrcp.pop %v1297
        %v1299 = vld [vmem:[#allocation9] sm:$0xff]
        %1301 = vset.pattern.permute.xlu0 0
        %1302 = vperm.xlu0 %1301, %v1298
        %v1303 = vpop.permute.xlu0 %1302
        %v1305 = vmul.f32 %v1299, %v1303
        %1307 = vrot.lane.b32.xlu0 %v1305, 24
        %v1308 = vpop.permute.xlu0 %1307
        %vm1310 = vcmask 261312
        %1311 = vst.msk [vmem:[#allocation5] sm:$0xff] %vm1310, %v1308
        %v1312 = vld [vmem:[#allocation5] sm:$0xff]
        %v1313 = vadd.f32 %v1312, %v394
        %1314 = vst.msk [vmem:[#allocation5] sm:$0xff] %vm396, %v1313
        %v1315 = vld [vmem:[#allocation5] sm:$0xff]
        %v1316 = vmul.f32 %v1315, %v1315
        %v1317 = vsel %vm396, %v1316, 0.0
        %1318 = vadd.xlane.f32.xlu0 %v1317
        %v1319 = vpop.xlane.xlu0 %1318
        %v1320 = vmul.f32 %v1319, %v400
        %v1321 = vadd.f32 %v1320, 1e-06
        %v1322 = vrsqrt.pop %v1321
        %v1323 = vmul.f32 %v1315, %v1322
        %v1324 = vpack.c.bf16 %v1323, %v1323
        %1325 = vst.msk [vmem:[#allocation6] sm:$0xf] %vm466, %v1324
        %v1326 = vld [vmem:[#allocation6] sm:$0xf]
        %v1327 = vld [vmem:[%s4] sm:$0xf]
        %v1328 = vld [vmem:[%s4 + $0x4] sm:$0xf]
        %v1329 = vld [vmem:[%s4 + $0x8] sm:$0xf]
        %v1330 = vld [vmem:[%s4 + $0xc] sm:$0xf]
        %v1331 = vld [vmem:[%s5] sm:$0x1]
        %v1333 = vlaneseq
        %v1334 = vshrl.u32 %v1333, 7
        %v1335 = vsub.s32 0, %v1334
        %v1336 = vrot.slane %v1331, %v1335
        %v1342 = vunpack.c.l.b16 %v1327
        %v1343 = vunpack.c.l.b16 %v1328
        %v1344 = vunpack.c.l.b16 %v1329
        %v1345 = vunpack.c.l.b16 %v1330
        %v1346 = vpack.c.b16 %v1343, %v1342
        %v1347 = vpack.c.b16 %v1345, %v1344
        %v1351 = vsel %vm396, %v1326, 0
        %1353 = vmatprep.subr.bf16.mxu0 0
        %1354 = vmatpush1.bf16.msra.mxu0 %v1346
        %1355 = vmatprep.subr.bf16.mxu0 0
        %1356 = vmatpush1.bf16.msra.mxu0 %v1347
        %1357 = vmatprep.subr.bf16.mxu0 0
        %1358 = vmatpush1.bf16.msra.mxu0 0
        %1359 = vmatprep.subr.bf16.mxu0 0
        %1360 = vmatpush1.bf16.msra.mxu0 0
        %1361 = vmatprep.subr.bf16.mxu0 0
        %1362 = vmatpush1.bf16.msra.mxu0 0
        %1363 = vmatprep.subr.bf16.mxu0 0
        %1364 = vmatpush1.bf16.msra.mxu0 0
        %1365 = vmatprep.subr.bf16.mxu0 0
        %1366 = vmatpush1.bf16.msra.mxu0 0
        %1367 = vmatprep.subr.bf16.mxu0 0
        %1368 = vmatpush1.bf16.msra.mxu0 0
        %1369 = vmatprep.subr.bf16.mxu0 0
        %1370 = vmatpush1.bf16.msra.mxu0 0
        %1371 = vmatprep.subr.bf16.mxu0 0
        %1372 = vmatpush1.bf16.msra.mxu0 0
        %1373 = vmatprep.subr.bf16.mxu0 0
        %1374 = vmatpush1.bf16.msra.mxu0 0
        %1375 = vmatprep.subr.bf16.mxu0 0
        %1376 = vmatpush1.bf16.msra.mxu0 0
        %1377 = vmatprep.subr.bf16.mxu0 0
        %1378 = vmatpush1.bf16.msra.mxu0 0
        %1379 = vmatprep.subr.bf16.mxu0 0
        %1380 = vmatpush1.bf16.msra.mxu0 0
        %1381 = vmatprep.subr.bf16.mxu0 0
        %1382 = vmatpush1.bf16.msra.mxu0 0
        %1383 = vmatprep.subr.bf16.mxu0 0
        %1384 = vmatpush1.bf16.msra.mxu0 0
        %1385 = vmatprep.mubr.bf16.mxu0 0
        %1386 = vmatmul.mubr.bf16.gmra.mrb[0].mxu0 %v1351
        %v1387 = vpop.f32.mrb[0].mxu0
        %v1388 = vadd.f32 %v1336, %v1387
        %v1389 = vpop.f32.mrb[0].mxu0
        %v1390 = vpop.f32.mrb[0].mxu0
        %v1391 = vpop.f32.mrb[0].mxu0
        %1392 = vdwg.mxu0
        %v1393 = vld [vmem:[%s8] sm:$0xf]
        %v1394 = vld [vmem:[%s8 + $0x4] sm:$0xf]
        %v1395 = vld [vmem:[%s8 + $0x8] sm:$0xf]
        %v1396 = vld [vmem:[%s8 + $0xc] sm:$0xf]
        %v1397 = vld [vmem:[%s9] sm:$0x1]
        %v1399 = vlaneseq
        %v1400 = vshrl.u32 %v1399, 7
        %v1401 = vsub.s32 0, %v1400
        %v1402 = vrot.slane %v1397, %v1401
        %v1408 = vunpack.c.l.b16 %v1393
        %v1409 = vunpack.c.l.b16 %v1394
        %v1410 = vunpack.c.l.b16 %v1395
        %v1411 = vunpack.c.l.b16 %v1396
        %v1412 = vpack.c.b16 %v1409, %v1408
        %v1413 = vpack.c.b16 %v1411, %v1410
        %1416 = vmatprep.subr.bf16.mxu0 0
        %1417 = vmatpush1.bf16.msra.mxu0 %v1412
        %1418 = vmatprep.subr.bf16.mxu0 0
        %1419 = vmatpush1.bf16.msra.mxu0 %v1413
        %1420 = vmatprep.subr.bf16.mxu0 0
        %1421 = vmatpush1.bf16.msra.mxu0 0
        %1422 = vmatprep.subr.bf16.mxu0 0
        %1423 = vmatpush1.bf16.msra.mxu0 0
        %1424 = vmatprep.subr.bf16.mxu0 0
        %1425 = vmatpush1.bf16.msra.mxu0 0
        %1426 = vmatprep.subr.bf16.mxu0 0
        %1427 = vmatpush1.bf16.msra.mxu0 0
        %1428 = vmatprep.subr.bf16.mxu0 0
        %1429 = vmatpush1.bf16.msra.mxu0 0
        %1430 = vmatprep.subr.bf16.mxu0 0
        %1431 = vmatpush1.bf16.msra.mxu0 0
        %1432 = vmatprep.subr.bf16.mxu0 0
        %1433 = vmatpush1.bf16.msra.mxu0 0
        %1434 = vmatprep.subr.bf16.mxu0 0
        %1435 = vmatpush1.bf16.msra.mxu0 0
        %1436 = vmatprep.subr.bf16.mxu0 0
        %1437 = vmatpush1.bf16.msra.mxu0 0
        %1438 = vmatprep.subr.bf16.mxu0 0
        %1439 = vmatpush1.bf16.msra.mxu0 0
        %1440 = vmatprep.subr.bf16.mxu0 0
        %1441 = vmatpush1.bf16.msra.mxu0 0
        %1442 = vmatprep.subr.bf16.mxu0 0
        %1443 = vmatpush1.bf16.msra.mxu0 0
        %1444 = vmatprep.subr.bf16.mxu0 0
        %1445 = vmatpush1.bf16.msra.mxu0 0
        %1446 = vmatprep.subr.bf16.mxu0 0
        %1447 = vmatpush1.bf16.msra.mxu0 0
        %1448 = vmatprep.mubr.bf16.mxu0 0
        %1449 = vmatmul.mubr.bf16.gmra.mrb[0].mxu0 %v1351
        %v1450 = vpop.f32.mrb[0].mxu0
        %v1451 = vadd.f32 %v1402, %v1450
        %v1452 = vpop.f32.mrb[0].mxu0
        %v1453 = vpop.f32.mrb[0].mxu0
        %v1454 = vpop.f32.mrb[0].mxu0
        %1455 = vdwg.mxu0
        %v1456 = vxor.u32 %v1388, 2147483648
        %v1457 = vmul.f32 %v1456, 1.442695
        %v1458 = vpow.pop %v1457
        %v1459 = vadd.f32 %v1458, 1.0
        %v1460 = vrcp.pop %v1459
        %v1461 = vmul.f32 1.0, %v1460
        %v1462 = vmul.f32 %v1388, %v1461
        %v1463 = vmul.f32 %v1462, %v1451
        %v1464 = vld [vmem:[#allocation5] sm:$0xff]
        %v1465 = vpack.c.bf16 %v1463, %v1463
        %v1466 = vld [vmem:[%s6] sm:$0xf]
        %v1467 = vld [vmem:[%s6 + $0x4] sm:$0xf]
        %v1468 = vld [vmem:[%s6 + $0x8] sm:$0xf]
        %v1469 = vld [vmem:[%s6 + $0xc] sm:$0xf]
        %v1470 = vld [vmem:[%s6 + $0x10] sm:$0xf]
        %v1471 = vld [vmem:[%s6 + $0x14] sm:$0xf]
        %v1472 = vld [vmem:[%s6 + $0x18] sm:$0xf]
        %v1473 = vld [vmem:[%s6 + $0x1c] sm:$0xf]
        %v1474 = vld [vmem:[%s6 + $0x20] sm:$0xf]
        %v1475 = vld [vmem:[%s6 + $0x24] sm:$0xf]
        %v1476 = vld [vmem:[%s6 + $0x28] sm:$0xf]
        %v1477 = vld [vmem:[%s6 + $0x2c] sm:$0xf]
        %v1478 = vld [vmem:[%s6 + $0x30] sm:$0xf]
        %v1479 = vld [vmem:[%s6 + $0x34] sm:$0xf]
        %v1480 = vld [vmem:[%s6 + $0x38] sm:$0xf]
        %v1481 = vld [vmem:[%s6 + $0x3c] sm:$0xf]
        %v1498 = vunpack.c.l.b16 %v1466
        %v1499 = vunpack.c.l.b16 %v1467
        %v1500 = vunpack.c.l.b16 %v1468
        %v1501 = vunpack.c.l.b16 %v1469
        %v1502 = vunpack.c.l.b16 %v1470
        %v1503 = vunpack.c.l.b16 %v1471
        %v1504 = vunpack.c.l.b16 %v1472
        %v1505 = vunpack.c.l.b16 %v1473
        %v1506 = vunpack.c.l.b16 %v1474
        %v1507 = vunpack.c.l.b16 %v1475
        %v1508 = vunpack.c.l.b16 %v1476
        %v1509 = vunpack.c.l.b16 %v1477
        %v1510 = vunpack.c.l.b16 %v1478
        %v1511 = vunpack.c.l.b16 %v1479
        %v1512 = vunpack.c.l.b16 %v1480
        %v1513 = vunpack.c.l.b16 %v1481
        %v1514 = vpack.c.b16 %v1499, %v1498
        %v1515 = vpack.c.b16 %v1501, %v1500
        %v1516 = vpack.c.b16 %v1503, %v1502
        %v1517 = vpack.c.b16 %v1505, %v1504
        %v1518 = vpack.c.b16 %v1507, %v1506
        %v1519 = vpack.c.b16 %v1509, %v1508
        %v1520 = vpack.c.b16 %v1511, %v1510
        %v1521 = vpack.c.b16 %v1513, %v1512
        %1530 = vmatprep.subr.bf16.mxu0 0
        %1531 = vmatpush1.bf16.msra.mxu0 %v1514
        %1532 = vmatprep.subr.bf16.mxu0 0
        %1533 = vmatpush1.bf16.msra.mxu0 %v1515
        %1534 = vmatprep.subr.bf16.mxu0 0
        %1535 = vmatpush1.bf16.msra.mxu0 %v1516
        %1536 = vmatprep.subr.bf16.mxu0 0
        %1537 = vmatpush1.bf16.msra.mxu0 %v1517
        %1538 = vmatprep.subr.bf16.mxu0 0
        %1539 = vmatpush1.bf16.msra.mxu0 %v1518
        %1540 = vmatprep.subr.bf16.mxu0 0
        %1541 = vmatpush1.bf16.msra.mxu0 %v1519
        %1542 = vmatprep.subr.bf16.mxu0 0
        %1543 = vmatpush1.bf16.msra.mxu0 %v1520
        %1544 = vmatprep.subr.bf16.mxu0 0
        %1545 = vmatpush1.bf16.msra.mxu0 %v1521
        %1546 = vmatprep.subr.bf16.mxu0 0
        %1547 = vmatpush1.bf16.msra.mxu0 0
        %1548 = vmatprep.subr.bf16.mxu0 0
        %1549 = vmatpush1.bf16.msra.mxu0 0
        %1550 = vmatprep.subr.bf16.mxu0 0
        %1551 = vmatpush1.bf16.msra.mxu0 0
        %1552 = vmatprep.subr.bf16.mxu0 0
        %1553 = vmatpush1.bf16.msra.mxu0 0
        %1554 = vmatprep.subr.bf16.mxu0 0
        %1555 = vmatpush1.bf16.msra.mxu0 0
        %1556 = vmatprep.subr.bf16.mxu0 0
        %1557 = vmatpush1.bf16.msra.mxu0 0
        %1558 = vmatprep.subr.bf16.mxu0 0
        %1559 = vmatpush1.bf16.msra.mxu0 0
        %1560 = vmatprep.subr.bf16.mxu0 0
        %1561 = vmatpush1.bf16.msra.mxu0 0
        %1562 = vmatprep.mubr.bf16.mxu0 0
        %1563 = vmatmul.mubr.bf16.gmra.mrb[0].mxu0 %v1465
        %v1564 = vpop.f32.mrb[0].mxu0
        %v1565 = vadd.f32 0.0, %v1564
        %v1566 = vpop.f32.mrb[0].mxu0
        %v1567 = vpop.f32.mrb[0].mxu0
        %v1568 = vpop.f32.mrb[0].mxu0
        %1569 = vdwg.mxu0
        %v1570 = vadd.f32 %v1464, %v1565
        %1571 = vst.msk [vmem:[#allocation5] sm:$0xff] %vm396, %v1570
        %v1572 = vld [vmem:[#allocation5] sm:$0xff]
        %v1573 = vld [vmem:[%s7] sm:$0x1]
        %v1575 = vlaneseq
        %v1576 = vshrl.u32 %v1575, 7
        %v1577 = vsub.s32 0, %v1576
        %v1578 = vrot.slane %v1573, %v1577
        %v1580 = vadd.f32 %v1572, %v1578
        %1581 = vst.msk [vmem:[%s391] sm:$0xff] %vm396, %v1580
        %s1582 = sand.u32 %s266, 1
        %s1583 = scalar_lea.sflag [#allocation12], %s1582
        %s1584 = sand.u32 %s266, 1
        %s1585 = smul.addr %s1584, 8
        %s1586 = scalar_lea.vmem [#allocation13], %s1585
        // Predicated region
        $region93: #{tpu_custom_call.1} parent=59 // pred_check
          %p1587 = pneg %p276
        $region94: #{tpu_custom_call.1} parent=59 // pred_check_branch
          %1589 = sbr.rel (%p1587) target = $region96
        $region95: #{tpu_custom_call.1} parent=59 // pred_region
          %s1591 = ssub.s32 128, 128
          %1592 = vsyncadd %s1583, %s1591
          %s1593 = sadd.s32 %s32, %s31
          %s1594 = smul.addr %s1593, 128
          %s1595 = scalar_lea.hbm %s10, %s1594
          %s1597 = sshll.u32 %s1586, 4
          %s1598 = int_to_ptr.vmem [resolvable:$true] %s1597
          %1600 = dma.vmem_to_hbm [thread:$0]  %s1598, 128, %s1595, %s1583
        $region96: #{tpu_custom_call.1} parent=59 // pred_fallthru
          _
      $region60: #{tpu_custom_call.1} parent=5 // pred_fallthru
        _
      %p1601 = scmp.le.s32.totalorder 2, %s22
      // Predicated region
      $region97: #{tpu_custom_call.1} parent=5 // pred_check
        %p1602 = pneg %p1601
      $region98: #{tpu_custom_call.1} parent=5 // pred_check_branch
        %1604 = sbr.rel (%p1602) target = $region100
      $region99: #{tpu_custom_call.1} parent=5 // pred_region
        %s1605 = ssub.s32 %s22, 2
        // Predicated region
        $region101: #{tpu_custom_call.1} parent=99 // pred_check
          %p1606 = pneg %p282
        $region102: #{tpu_custom_call.1} parent=99 // pred_check_branch
          %1608 = sbr.rel (%p1606) target = $region104
        $region103: #{tpu_custom_call.1} parent=99 // pred_region
          %s1609 = sand.u32 %s267, 1
          %s1610 = scalar_lea.sflag [#allocation12], %s1609
          %s1611 = sand.u32 %s267, 1
          %s1612 = smul.addr %s1611, 8
          %s1613 = scalar_lea.vmem [#allocation13], %s1612
          %1614 = dma.done %s1610, 128
        $region104: #{tpu_custom_call.1} parent=99 // pred_fallthru
          _
      $region100: #{tpu_custom_call.1} parent=5 // pred_fallthru
        _
    $region6: #{tpu_custom_call.1} parent=1 // loop_footer
      %s26 = sadd.s32 1, %s22
    $region7: #{tpu_custom_call.1} parent=1 // loop_footer_branch
      %21 = sbr.rel target = $region3
    $region8: #{tpu_custom_call.1} parent=1 // loop_exit
      _
    %1615 = vsyncpa [#allocation11], 1
    %s1616 = scalar_lea.sflag [#allocation11], 1
    %1617 = vsyncpa %s1616, 1
    %1618 = vsyncpa [#allocation12], 1
    %s1619 = scalar_lea.sflag [#allocation12], 1
    %1620 = vsyncpa %s1619, 1

</llo_original>
